<compile_context>
chip_gen: v7x
topology: tpu7x:2x2x1
jax: 0.10.0
libtpu: 0.0.40
codegen_flags: <defaults>
</compile_context>

<pallas_src>
import jax
import jax.numpy as jnp
import numpy as np
from jax.experimental import pallas as pl
from jax.experimental.pallas import tpu as pltpu

EPS = 1e-6
_LANE = 128


# ----------------------------------------------------------------------------
# Fused Pallas kernel
# ----------------------------------------------------------------------------
def _gat_mnist_kernel(
    x_ref, mst_ref, mtgt_ref, mgt_ref,
    ws1_ref, wt1_ref, bf1_ref,
    ws2_ref, wt2_ref, bf2_ref,
    ws3_ref, wt3_ref, bf3_ref,
    w1_ref, b1_ref, w2_ref, b2_ref,
    o_ref,
):
    """Fused 3x GATLayerEdgeSoftmax + graph readout + 2-layer MLP.

    x_ref    : (N, Fp)        node features (feature dim padded to sublane mult.)
    mst_ref  : (E, 2N)        [Msrc^T | Mtgt^T]  (scatter nodes -> edges)
    mtgt_ref : (N, E)         Mtgt               (aggregate edges -> target nodes)
    mgt_ref  : (G, N)         Mgraph^T           (graph readout, pre-transposed)
    ws*_ref  : (d_i, d_o+1)   [Wf_src | Ww_src]  packed feature+attention proj
    wt*_ref  : (d_i, d_o+1)   [Wf_tgt | Ww_tgt]
    bf*_ref  : (1, d_o+1)     [bf | 0]
    w1/b1    : (64, 32)/(1, 32)   MLP layer 1
    w2/b2    : (32, 128)/(1, 128) MLP layer 2, zero-padded to 128 lanes
    o_ref    : (G, 128)       lane-dense logits slab (sliced to C in wrapper)
    """
    mst = mst_ref[...]
    mtgt = mtgt_ref[...]
    n_edges = mst.shape[0]

    def gat_layer(x, ws_ref, wt_ref, bf_ref):
        d_o = ws_ref.shape[1] - 1
        # Per-node projections: 2*N*d_i*(d_o+1) flops instead of E*2*d_i*d_o.
        ps = jnp.dot(x, ws_ref[...], preferred_element_type=jnp.float32)  # (N, d_o+1)
        pt = jnp.dot(x, wt_ref[...], preferred_element_type=jnp.float32)  # (N, d_o+1)
        # Softmax stabiliser: per-node upper bound on the per-edge logit.
        # The reference subtracts the exact global max over edges; softmax is
        # shift-invariant, so any upper bound gives the same output.
        a_base = (
            jnp.max(ps[:, d_o:d_o + 1], axis=0, keepdims=True)
            + jnp.max(pt[:, d_o:d_o + 1], axis=0, keepdims=True)
        )                                                                  # (1, 1)
        # Scatter node projections onto edges: one MXU pass over [Msrc^T|Mtgt^T].
        pe = jnp.dot(
            mst, jnp.concatenate([ps, pt], axis=0),
            preferred_element_type=jnp.float32,
        )                                                                  # (E, d_o+1)
        a_exp = jnp.exp(pe[:, d_o:d_o + 1] - a_base)                       # (E, 1)
        # Column j < d_o: relu(f(h)); column d_o: constant 1 (denominator lane).
        col = jax.lax.broadcasted_iota(jnp.int32, (n_edges, d_o + 1), 1)
        edge_vals = jnp.where(
            col < d_o, jnp.maximum(pe + bf_ref[...], 0.0), 1.0
        ) * a_exp                                                          # (E, d_o+1)
        # Single Mtgt pass produces numerator and denominator together.
        agg = jnp.dot(mtgt, edge_vals, preferred_element_type=jnp.float32)  # (N, d_o+1)
        inv_den = pl.reciprocal(agg[:, d_o:d_o + 1] + EPS, approx=True)
        return agg[:, :d_o] * inv_den                                      # (N, d_o)

    x = x_ref[...]
    x = gat_layer(x, ws1_ref, wt1_ref, bf1_ref)
    x = gat_layer(x, ws2_ref, wt2_ref, bf2_ref)
    x = gat_layer(x, ws3_ref, wt3_ref, bf3_ref)

    # Graph readout + MLP; logits kept in a lane-dense 128-wide slab.
    g = jnp.dot(mgt_ref[...], x, preferred_element_type=jnp.float32)       # (G, 64)
    h1 = jnp.maximum(
        jnp.dot(g, w1_ref[...], preferred_element_type=jnp.float32) + b1_ref[...],
        0.0,
    )                                                                      # (G, 32)
    o_ref[...] = (
        jnp.dot(h1, w2_ref[...], preferred_element_type=jnp.float32) + b2_ref[...]
    )


def _vmem_spec():
    return pl.BlockSpec(memory_space=pltpu.MemorySpace.VMEM)


# ----------------------------------------------------------------------------
# Wrapper: layout plumbing (transposes / padding / packing) stays outside
# ----------------------------------------------------------------------------
@jax.jit
def gat_mnist_forward(params, x, adj, src, tgt, msrc, mtgt, mgraph):
    """Matches GAT_MNIST_20191016134.forward(x, adj, src, tgt, Msrc, Mtgt, Mgraph).

    adj/src/tgt are accepted for interface fidelity; the edge structure is
    consumed via the one-hot incidence matrices Msrc/Mtgt (x[src] == Msrc^T @ x).
    """
    del adj, src, tgt
    f = x.shape[1]

    # Layout plumbing outside the kernel (free): scatter matrix + pre-transpose.
    mst = jnp.concatenate([msrc.T, mtgt.T], axis=1).astype(jnp.float32)   # (E, 2N)
    mgt = mgraph.T.astype(jnp.float32)                                    # (G, N)

    g1, g2, g3 = params["gat"]
    mp = params["mlp"]

    # Pad the tiny first-layer contraction dim up to a sublane multiple (exact).
    fp = ((f + 7) // 8) * 8
    x_in = jnp.pad(x.astype(jnp.float32), ((0, 0), (0, fp - f)))
    ws1 = jnp.pad(g1["wsrc"], ((0, fp - f), (0, 0)))
    wt1 = jnp.pad(g1["wtgt"], ((0, fp - f), (0, 0)))

    # Pad logits to a lane-dense 128-wide output slab; slice back afterwards.
    c = mp["w2"].shape[1]
    w2p = jnp.pad(mp["w2"], ((0, 0), (0, _LANE - c)))
    b2p = jnp.pad(mp["b2"], ((0, 0), (0, _LANE - c)))

    out = pl.pallas_call(
        _gat_mnist_kernel,
        out_shape=jax.ShapeDtypeStruct((mgraph.shape[1], _LANE), jnp.float32),
        in_specs=[_vmem_spec() for _ in range(17)],
        out_specs=_vmem_spec(),
    )(
        x_in, mst, mtgt.astype(jnp.float32), mgt,
        ws1, wt1, g1["bf"],
        g2["wsrc"], g2["wtgt"], g2["bf"],
        g3["wsrc"], g3["wtgt"], g3["bf"],
        mp["w1"], mp["b1"], w2p, b2p,
    )
    return out[:, :c]


# ----------------------------------------------------------------------------
# Parameter initialization (xavier for GAT weights, as in the reference)
# ----------------------------------------------------------------------------
def _xavier_uniform(key, fan_in, fan_out):
    bound = float(np.sqrt(6.0 / (fan_in + fan_out)))
    # (in, out) layout (pre-transposed vs. PyTorch's (out, in)).
    return jax.random.uniform(key, (fan_in, fan_out), jnp.float32, -bound, bound)


def _linear_bias(key, fan_in, fan_out):
    bound = 1.0 / float(np.sqrt(fan_in))
    return jax.random.uniform(key, (1, fan_out), jnp.float32, -bound, bound)


def init_params(key, num_features, num_classes):
    gat_sizes = [num_features, 32, 64, 64]
    params = {"gat": []}
    for d_i, d_o in zip(gat_sizes[:-1], gat_sizes[1:]):
        key, k1, k2, k3 = jax.random.split(key, 4)
        wf = _xavier_uniform(k1, 2 * d_i, d_o)   # (2*d_i, d_o)
        bf = _linear_bias(k2, 2 * d_i, d_o)      # (1, d_o)
        ww = _xavier_uniform(k3, 2 * d_i, 1)     # (2*d_i, 1)
        # The attention bias bw shifts every logit equally and the reference
        # subtracts the global max, so bw has exactly zero effect -> dropped.
        params["gat"].append({
            # packed per-node projections: [feature proj | attention proj]
            "wsrc": jnp.concatenate([wf[:d_i], ww[:d_i]], axis=1),  # (d_i, d_o+1)
            "wtgt": jnp.concatenate([wf[d_i:], ww[d_i:]], axis=1),  # (d_i, d_o+1)
            "bf": jnp.concatenate([bf, jnp.zeros((1, 1), jnp.float32)], axis=1),
        })
    key, k1, k2, k3, k4 = jax.random.split(key, 5)
    params["mlp"] = {
        "w1": _xavier_uniform(k1, gat_sizes[-1], 32),
        "b1": _linear_bias(k2, gat_sizes[-1], 32),
        "w2": _xavier_uniform(k3, 32, num_classes),
        "b2": _linear_bias(k4, 32, num_classes),
    }
    return params


# ----------------------------------------------------------------------------
# Pure-JAX reference (mirrors the PyTorch forward, exact global-max stabiliser)
# ----------------------------------------------------------------------------
def reference_forward(params, x, src, tgt, mtgt, mgraph):
    for lp in params["gat"]:
        d_o = lp["wsrc"].shape[1] - 1
        ps = x[src] @ lp["wsrc"]                  # (E, d_o+1)
        pt = x[tgt] @ lp["wtgt"]
        y = jax.nn.relu(ps[:, :d_o] + pt[:, :d_o] + lp["bf"][:, :d_o])
        a = ps[:, d_o:] + pt[:, d_o:]
        a_exp = jnp.exp(a - jnp.max(a, axis=0, keepdims=True))
        a_sum = mtgt @ a_exp + EPS
        x = (mtgt @ (y * a_exp)) / a_sum
    mp = params["mlp"]
    gx = mgraph.T @ x
    h1 = jax.nn.relu(gx @ mp["w1"] + mp["b1"])
    return h1 @ mp["w2"] + mp["b2"]


# ----------------------------------------------------------------------------
if __name__ == "__main__":
    num_features = 4
    num_classes = 10
    N, E, G = 16, 48, 2   # nodes, edges, graphs

    key = jax.random.PRNGKey(0)
    key, kx, ksrc, ktgt = jax.random.split(key, 4)

    x = jax.random.normal(kx, (N, num_features), jnp.float32)
    src = jax.random.randint(ksrc, (E,), 0, N, jnp.int32)
    tgt = jax.random.randint(ktgt, (E,), 0, N, jnp.int32)
    adj = jnp.zeros((N, N), jnp.float32)  # unused by the reference forward

    # One-hot incidence matrices (as in the original data pipeline).
    msrc = (jnp.arange(N)[:, None] == src[None, :]).astype(jnp.float32)   # (N, E)
    mtgt = (jnp.arange(N)[:, None] == tgt[None, :]).astype(jnp.float32)   # (N, E)
    graph_of_node = (jnp.arange(N) >= (N // 2)).astype(jnp.int32)
    mgraph = (graph_of_node[:, None] == jnp.arange(G)[None, :]).astype(jnp.float32)

    params = init_params(key, num_features, num_classes)

    out = gat_mnist_forward(params, x, adj, src, tgt, msrc, mtgt, mgraph)
    out = jax.block_until_ready(out)

    assert out.shape == (G, num_classes)
    assert not bool(jnp.isnan(out).any())

    ref = reference_forward(params, x, src, tgt, mtgt, mgraph)
    err = float(jnp.max(jnp.abs(out - ref)))
    assert np.allclose(np.asarray(out), np.asarray(ref), rtol=1e-2, atol=1e-2), err

    print("KERNEL_OK")
</pallas_src>

<mosaic_0001>
module attributes {stable_mosaic.version = 11 : i64} {
  func.func @_gat_mnist_kernel(%arg0: memref<16x8xf32, #tpu.memory_space<vmem>>, %arg1: memref<48x32xf32, #tpu.memory_space<vmem>>, %arg2: memref<16x48xf32, #tpu.memory_space<vmem>>, %arg3: memref<2x16xf32, #tpu.memory_space<vmem>>, %arg4: memref<8x33xf32, #tpu.memory_space<vmem>>, %arg5: memref<8x33xf32, #tpu.memory_space<vmem>>, %arg6: memref<1x33xf32, #tpu.memory_space<vmem>>, %arg7: memref<32x65xf32, #tpu.memory_space<vmem>>, %arg8: memref<32x65xf32, #tpu.memory_space<vmem>>, %arg9: memref<1x65xf32, #tpu.memory_space<vmem>>, %arg10: memref<64x65xf32, #tpu.memory_space<vmem>>, %arg11: memref<64x65xf32, #tpu.memory_space<vmem>>, %arg12: memref<1x65xf32, #tpu.memory_space<vmem>>, %arg13: memref<64x32xf32, #tpu.memory_space<vmem>>, %arg14: memref<1x32xf32, #tpu.memory_space<vmem>>, %arg15: memref<32x128xf32, #tpu.memory_space<vmem>>, %arg16: memref<1x128xf32, #tpu.memory_space<vmem>>, %arg17: memref<2x128xf32, #tpu.memory_space<vmem>>) attributes {dimension_semantics = [], scalar_prefetch = 0 : i64, scratch_operands = 0 : i64, tpu.core_type = #tpu.core_type<tc>} {
    %c0 = arith.constant 0 : index
    %c0_0 = arith.constant 0 : index
    %0 = vector.load %arg1[%c0, %c0_0] : memref<48x32xf32, #tpu.memory_space<vmem>>, vector<48x32xf32>
    %c0_1 = arith.constant 0 : index
    %c0_2 = arith.constant 0 : index
    %1 = vector.load %arg2[%c0_1, %c0_2] : memref<16x48xf32, #tpu.memory_space<vmem>>, vector<16x48xf32>
    %c0_3 = arith.constant 0 : index
    %c0_4 = arith.constant 0 : index
    %2 = vector.load %arg0[%c0_3, %c0_4] : memref<16x8xf32, #tpu.memory_space<vmem>>, vector<16x8xf32>
    %c0_5 = arith.constant 0 : index
    %c0_6 = arith.constant 0 : index
    %3 = vector.load %arg4[%c0_5, %c0_6] : memref<8x33xf32, #tpu.memory_space<vmem>>, vector<8x33xf32>
    %cst = arith.constant dense<0.000000e+00> : vector<16x33xf32>
    %4 = tpu.matmul %2, %3, %cst {dimension_numbers = #tpu.dot_dimension_numbers<[1], [0], [0], [1], [0, 0, 1, 1], [], []>} : vector<16x8xf32>, vector<8x33xf32>, vector<16x33xf32> -> vector<16x33xf32>
    %c0_7 = arith.constant 0 : index
    %c0_8 = arith.constant 0 : index
    %5 = vector.load %arg5[%c0_7, %c0_8] : memref<8x33xf32, #tpu.memory_space<vmem>>, vector<8x33xf32>
    %cst_9 = arith.constant dense<0.000000e+00> : vector<16x33xf32>
    %6 = tpu.matmul %2, %5, %cst_9 {dimension_numbers = #tpu.dot_dimension_numbers<[1], [0], [0], [1], [0, 0, 1, 1], [], []>} : vector<16x8xf32>, vector<8x33xf32>, vector<16x33xf32> -> vector<16x33xf32>
    %7 = vector.extract_strided_slice %4 {offsets = [0, 32], sizes = [16, 1], strides = [1, 1]} : vector<16x33xf32> to vector<16x1xf32>
    %cst_10 = arith.constant dense<0xFF800000> : vector<1xf32>
    %8 = vector.multi_reduction <maximumf>, %7, %cst_10 [0] : vector<16x1xf32> to vector<1xf32>
    %9 = vector.shape_cast %8 : vector<1xf32> to vector<1x1xf32>
    %10 = vector.extract_strided_slice %6 {offsets = [0, 32], sizes = [16, 1], strides = [1, 1]} : vector<16x33xf32> to vector<16x1xf32>
    %cst_11 = arith.constant dense<0xFF800000> : vector<1xf32>
    %11 = vector.multi_reduction <maximumf>, %10, %cst_11 [0] : vector<16x1xf32> to vector<1xf32>
    %12 = vector.shape_cast %11 : vector<1xf32> to vector<1x1xf32>
    %13 = arith.addf %9, %12 : vector<1x1xf32>
    %14 = tpu.concatenate %4, %6 in 0 : vector<16x33xf32>, vector<16x33xf32> -> vector<32x33xf32>
    %cst_12 = arith.constant dense<0.000000e+00> : vector<48x33xf32>
    %15 = tpu.matmul %0, %14, %cst_12 {dimension_numbers = #tpu.dot_dimension_numbers<[1], [0], [0], [1], [0, 0, 1, 1], [], []>} : vector<48x32xf32>, vector<32x33xf32>, vector<48x33xf32> -> vector<48x33xf32>
    %16 = vector.extract_strided_slice %15 {offsets = [0, 32], sizes = [48, 1], strides = [1, 1]} : vector<48x33xf32> to vector<48x1xf32>
    %17 = vector.broadcast %13 : vector<1x1xf32> to vector<48x1xf32>
    %18 = arith.subf %16, %17 : vector<48x1xf32>
    %19 = math.exp %18 : vector<48x1xf32>
    %20 = tpu.iota {dimensions = array<i32: 1>} : vector<48x33xi32>
    %c32_i32 = arith.constant 32 : i32
    %21 = vector.broadcast %c32_i32 : i32 to vector<48x33xi32>
    %22 = arith.cmpi slt, %20, %21 : vector<48x33xi32>
    %c0_13 = arith.constant 0 : index
    %c0_14 = arith.constant 0 : index
    %23 = vector.load %arg6[%c0_13, %c0_14] : memref<1x33xf32, #tpu.memory_space<vmem>>, vector<1x33xf32>
    %24 = vector.broadcast %23 : vector<1x33xf32> to vector<48x33xf32>
    %25 = arith.addf %15, %24 : vector<48x33xf32>
    %cst_15 = arith.constant 0.000000e+00 : f32
    %26 = vector.broadcast %cst_15 : f32 to vector<48x33xf32>
    %27 = arith.maximumf %25, %26 : vector<48x33xf32>
    %cst_16 = arith.constant 1.000000e+00 : f32
    %28 = vector.broadcast %cst_16 : f32 to vector<48x33xf32>
    %29 = arith.select %22, %27, %28 : vector<48x33xi1>, vector<48x33xf32>
    %30 = vector.broadcast %19 : vector<48x1xf32> to vector<48x33xf32>
    %31 = arith.mulf %29, %30 : vector<48x33xf32>
    %cst_17 = arith.constant dense<0.000000e+00> : vector<16x33xf32>
    %32 = tpu.matmul %1, %31, %cst_17 {dimension_numbers = #tpu.dot_dimension_numbers<[1], [0], [0], [1], [0, 0, 1, 1], [], []>} : vector<16x48xf32>, vector<48x33xf32>, vector<16x33xf32> -> vector<16x33xf32>
    %33 = vector.extract_strided_slice %32 {offsets = [0, 32], sizes = [16, 1], strides = [1, 1]} : vector<16x33xf32> to vector<16x1xf32>
    %cst_18 = arith.constant 9.99999997E-7 : f32
    %34 = vector.broadcast %cst_18 : f32 to vector<16x1xf32>
    %35 = arith.addf %33, %34 : vector<16x1xf32>
    %36 = tpu.reciprocal %35 {approx = true} : vector<16x1xf32> -> vector<16x1xf32>
    %37 = vector.extract_strided_slice %32 {offsets = [0, 0], sizes = [16, 32], strides = [1, 1]} : vector<16x33xf32> to vector<16x32xf32>
    %38 = vector.broadcast %36 : vector<16x1xf32> to vector<16x32xf32>
    %39 = arith.mulf %37, %38 : vector<16x32xf32>
    %c0_19 = arith.constant 0 : index
    %c0_20 = arith.constant 0 : index
    %40 = vector.load %arg7[%c0_19, %c0_20] : memref<32x65xf32, #tpu.memory_space<vmem>>, vector<32x65xf32>
    %cst_21 = arith.constant dense<0.000000e+00> : vector<16x65xf32>
    %41 = tpu.matmul %39, %40, %cst_21 {dimension_numbers = #tpu.dot_dimension_numbers<[1], [0], [0], [1], [0, 0, 1, 1], [], []>} : vector<16x32xf32>, vector<32x65xf32>, vector<16x65xf32> -> vector<16x65xf32>
    %c0_22 = arith.constant 0 : index
    %c0_23 = arith.constant 0 : index
    %42 = vector.load %arg8[%c0_22, %c0_23] : memref<32x65xf32, #tpu.memory_space<vmem>>, vector<32x65xf32>
    %cst_24 = arith.constant dense<0.000000e+00> : vector<16x65xf32>
    %43 = tpu.matmul %39, %42, %cst_24 {dimension_numbers = #tpu.dot_dimension_numbers<[1], [0], [0], [1], [0, 0, 1, 1], [], []>} : vector<16x32xf32>, vector<32x65xf32>, vector<16x65xf32> -> vector<16x65xf32>
    %44 = vector.extract_strided_slice %41 {offsets = [0, 64], sizes = [16, 1], strides = [1, 1]} : vector<16x65xf32> to vector<16x1xf32>
    %cst_25 = arith.constant dense<0xFF800000> : vector<1xf32>
    %45 = vector.multi_reduction <maximumf>, %44, %cst_25 [0] : vector<16x1xf32> to vector<1xf32>
    %46 = vector.shape_cast %45 : vector<1xf32> to vector<1x1xf32>
    %47 = vector.extract_strided_slice %43 {offsets = [0, 64], sizes = [16, 1], strides = [1, 1]} : vector<16x65xf32> to vector<16x1xf32>
    %cst_26 = arith.constant dense<0xFF800000> : vector<1xf32>
    %48 = vector.multi_reduction <maximumf>, %47, %cst_26 [0] : vector<16x1xf32> to vector<1xf32>
    %49 = vector.shape_cast %48 : vector<1xf32> to vector<1x1xf32>
    %50 = arith.addf %46, %49 : vector<1x1xf32>
    %51 = tpu.concatenate %41, %43 in 0 : vector<16x65xf32>, vector<16x65xf32> -> vector<32x65xf32>
    %cst_27 = arith.constant dense<0.000000e+00> : vector<48x65xf32>
    %52 = tpu.matmul %0, %51, %cst_27 {dimension_numbers = #tpu.dot_dimension_numbers<[1], [0], [0], [1], [0, 0, 1, 1], [], []>} : vector<48x32xf32>, vector<32x65xf32>, vector<48x65xf32> -> vector<48x65xf32>
    %53 = vector.extract_strided_slice %52 {offsets = [0, 64], sizes = [48, 1], strides = [1, 1]} : vector<48x65xf32> to vector<48x1xf32>
    %54 = vector.broadcast %50 : vector<1x1xf32> to vector<48x1xf32>
    %55 = arith.subf %53, %54 : vector<48x1xf32>
    %56 = math.exp %55 : vector<48x1xf32>
    %57 = tpu.iota {dimensions = array<i32: 1>} : vector<48x65xi32>
    %c64_i32 = arith.constant 64 : i32
    %58 = vector.broadcast %c64_i32 : i32 to vector<48x65xi32>
    %59 = arith.cmpi slt, %57, %58 : vector<48x65xi32>
    %c0_28 = arith.constant 0 : index
    %c0_29 = arith.constant 0 : index
    %60 = vector.load %arg9[%c0_28, %c0_29] : memref<1x65xf32, #tpu.memory_space<vmem>>, vector<1x65xf32>
    %61 = vector.broadcast %60 : vector<1x65xf32> to vector<48x65xf32>
    %62 = arith.addf %52, %61 : vector<48x65xf32>
    %cst_30 = arith.constant 0.000000e+00 : f32
    %63 = vector.broadcast %cst_30 : f32 to vector<48x65xf32>
    %64 = arith.maximumf %62, %63 : vector<48x65xf32>
    %cst_31 = arith.constant 1.000000e+00 : f32
    %65 = vector.broadcast %cst_31 : f32 to vector<48x65xf32>
    %66 = arith.select %59, %64, %65 : vector<48x65xi1>, vector<48x65xf32>
    %67 = vector.broadcast %56 : vector<48x1xf32> to vector<48x65xf32>
    %68 = arith.mulf %66, %67 : vector<48x65xf32>
    %cst_32 = arith.constant dense<0.000000e+00> : vector<16x65xf32>
    %69 = tpu.matmul %1, %68, %cst_32 {dimension_numbers = #tpu.dot_dimension_numbers<[1], [0], [0], [1], [0, 0, 1, 1], [], []>} : vector<16x48xf32>, vector<48x65xf32>, vector<16x65xf32> -> vector<16x65xf32>
    %70 = vector.extract_strided_slice %69 {offsets = [0, 64], sizes = [16, 1], strides = [1, 1]} : vector<16x65xf32> to vector<16x1xf32>
    %cst_33 = arith.constant 9.99999997E-7 : f32
    %71 = vector.broadcast %cst_33 : f32 to vector<16x1xf32>
    %72 = arith.addf %70, %71 : vector<16x1xf32>
    %73 = tpu.reciprocal %72 {approx = true} : vector<16x1xf32> -> vector<16x1xf32>
    %74 = vector.extract_strided_slice %69 {offsets = [0, 0], sizes = [16, 64], strides = [1, 1]} : vector<16x65xf32> to vector<16x64xf32>
    %75 = vector.broadcast %73 : vector<16x1xf32> to vector<16x64xf32>
    %76 = arith.mulf %74, %75 : vector<16x64xf32>
    %c0_34 = arith.constant 0 : index
    %c0_35 = arith.constant 0 : index
    %77 = vector.load %arg10[%c0_34, %c0_35] : memref<64x65xf32, #tpu.memory_space<vmem>>, vector<64x65xf32>
    %cst_36 = arith.constant dense<0.000000e+00> : vector<16x65xf32>
    %78 = tpu.matmul %76, %77, %cst_36 {dimension_numbers = #tpu.dot_dimension_numbers<[1], [0], [0], [1], [0, 0, 1, 1], [], []>} : vector<16x64xf32>, vector<64x65xf32>, vector<16x65xf32> -> vector<16x65xf32>
    %c0_37 = arith.constant 0 : index
    %c0_38 = arith.constant 0 : index
    %79 = vector.load %arg11[%c0_37, %c0_38] : memref<64x65xf32, #tpu.memory_space<vmem>>, vector<64x65xf32>
    %cst_39 = arith.constant dense<0.000000e+00> : vector<16x65xf32>
    %80 = tpu.matmul %76, %79, %cst_39 {dimension_numbers = #tpu.dot_dimension_numbers<[1], [0], [0], [1], [0, 0, 1, 1], [], []>} : vector<16x64xf32>, vector<64x65xf32>, vector<16x65xf32> -> vector<16x65xf32>
    %81 = vector.extract_strided_slice %78 {offsets = [0, 64], sizes = [16, 1], strides = [1, 1]} : vector<16x65xf32> to vector<16x1xf32>
    %cst_40 = arith.constant dense<0xFF800000> : vector<1xf32>
    %82 = vector.multi_reduction <maximumf>, %81, %cst_40 [0] : vector<16x1xf32> to vector<1xf32>
    %83 = vector.shape_cast %82 : vector<1xf32> to vector<1x1xf32>
    %84 = vector.extract_strided_slice %80 {offsets = [0, 64], sizes = [16, 1], strides = [1, 1]} : vector<16x65xf32> to vector<16x1xf32>
    %cst_41 = arith.constant dense<0xFF800000> : vector<1xf32>
    %85 = vector.multi_reduction <maximumf>, %84, %cst_41 [0] : vector<16x1xf32> to vector<1xf32>
    %86 = vector.shape_cast %85 : vector<1xf32> to vector<1x1xf32>
    %87 = arith.addf %83, %86 : vector<1x1xf32>
    %88 = tpu.concatenate %78, %80 in 0 : vector<16x65xf32>, vector<16x65xf32> -> vector<32x65xf32>
    %cst_42 = arith.constant dense<0.000000e+00> : vector<48x65xf32>
    %89 = tpu.matmul %0, %88, %cst_42 {dimension_numbers = #tpu.dot_dimension_numbers<[1], [0], [0], [1], [0, 0, 1, 1], [], []>} : vector<48x32xf32>, vector<32x65xf32>, vector<48x65xf32> -> vector<48x65xf32>
    %90 = vector.extract_strided_slice %89 {offsets = [0, 64], sizes = [48, 1], strides = [1, 1]} : vector<48x65xf32> to vector<48x1xf32>
    %91 = vector.broadcast %87 : vector<1x1xf32> to vector<48x1xf32>
    %92 = arith.subf %90, %91 : vector<48x1xf32>
    %93 = math.exp %92 : vector<48x1xf32>
    %94 = tpu.iota {dimensions = array<i32: 1>} : vector<48x65xi32>
    %c64_i32_43 = arith.constant 64 : i32
    %95 = vector.broadcast %c64_i32_43 : i32 to vector<48x65xi32>
    %96 = arith.cmpi slt, %94, %95 : vector<48x65xi32>
    %c0_44 = arith.constant 0 : index
    %c0_45 = arith.constant 0 : index
    %97 = vector.load %arg12[%c0_44, %c0_45] : memref<1x65xf32, #tpu.memory_space<vmem>>, vector<1x65xf32>
    %98 = vector.broadcast %97 : vector<1x65xf32> to vector<48x65xf32>
    %99 = arith.addf %89, %98 : vector<48x65xf32>
    %cst_46 = arith.constant 0.000000e+00 : f32
    %100 = vector.broadcast %cst_46 : f32 to vector<48x65xf32>
    %101 = arith.maximumf %99, %100 : vector<48x65xf32>
    %cst_47 = arith.constant 1.000000e+00 : f32
    %102 = vector.broadcast %cst_47 : f32 to vector<48x65xf32>
    %103 = arith.select %96, %101, %102 : vector<48x65xi1>, vector<48x65xf32>
    %104 = vector.broadcast %93 : vector<48x1xf32> to vector<48x65xf32>
    %105 = arith.mulf %103, %104 : vector<48x65xf32>
    %cst_48 = arith.constant dense<0.000000e+00> : vector<16x65xf32>
    %106 = tpu.matmul %1, %105, %cst_48 {dimension_numbers = #tpu.dot_dimension_numbers<[1], [0], [0], [1], [0, 0, 1, 1], [], []>} : vector<16x48xf32>, vector<48x65xf32>, vector<16x65xf32> -> vector<16x65xf32>
    %107 = vector.extract_strided_slice %106 {offsets = [0, 64], sizes = [16, 1], strides = [1, 1]} : vector<16x65xf32> to vector<16x1xf32>
    %cst_49 = arith.constant 9.99999997E-7 : f32
    %108 = vector.broadcast %cst_49 : f32 to vector<16x1xf32>
    %109 = arith.addf %107, %108 : vector<16x1xf32>
    %110 = tpu.reciprocal %109 {approx = true} : vector<16x1xf32> -> vector<16x1xf32>
    %111 = vector.extract_strided_slice %106 {offsets = [0, 0], sizes = [16, 64], strides = [1, 1]} : vector<16x65xf32> to vector<16x64xf32>
    %112 = vector.broadcast %110 : vector<16x1xf32> to vector<16x64xf32>
    %113 = arith.mulf %111, %112 : vector<16x64xf32>
    %c0_50 = arith.constant 0 : index
    %c0_51 = arith.constant 0 : index
    %114 = vector.load %arg3[%c0_50, %c0_51] : memref<2x16xf32, #tpu.memory_space<vmem>>, vector<2x16xf32>
    %cst_52 = arith.constant dense<0.000000e+00> : vector<2x64xf32>
    %115 = tpu.matmul %114, %113, %cst_52 {dimension_numbers = #tpu.dot_dimension_numbers<[1], [0], [0], [1], [0, 0, 1, 1], [], []>} : vector<2x16xf32>, vector<16x64xf32>, vector<2x64xf32> -> vector<2x64xf32>
    %c0_53 = arith.constant 0 : index
    %c0_54 = arith.constant 0 : index
    %116 = vector.load %arg13[%c0_53, %c0_54] : memref<64x32xf32, #tpu.memory_space<vmem>>, vector<64x32xf32>
    %cst_55 = arith.constant dense<0.000000e+00> : vector<2x32xf32>
    %117 = tpu.matmul %115, %116, %cst_55 {dimension_numbers = #tpu.dot_dimension_numbers<[1], [0], [0], [1], [0, 0, 1, 1], [], []>} : vector<2x64xf32>, vector<64x32xf32>, vector<2x32xf32> -> vector<2x32xf32>
    %c0_56 = arith.constant 0 : index
    %c0_57 = arith.constant 0 : index
    %118 = vector.load %arg14[%c0_56, %c0_57] : memref<1x32xf32, #tpu.memory_space<vmem>>, vector<1x32xf32>
    %119 = vector.broadcast %118 : vector<1x32xf32> to vector<2x32xf32>
    %120 = arith.addf %117, %119 : vector<2x32xf32>
    %cst_58 = arith.constant 0.000000e+00 : f32
    %121 = vector.broadcast %cst_58 : f32 to vector<2x32xf32>
    %122 = arith.maximumf %120, %121 : vector<2x32xf32>
    %c0_59 = arith.constant 0 : index
    %c0_60 = arith.constant 0 : index
    %123 = vector.load %arg15[%c0_59, %c0_60] : memref<32x128xf32, #tpu.memory_space<vmem>>, vector<32x128xf32>
    %cst_61 = arith.constant dense<0.000000e+00> : vector<2x128xf32>
    %124 = tpu.matmul %122, %123, %cst_61 {dimension_numbers = #tpu.dot_dimension_numbers<[1], [0], [0], [1], [0, 0, 1, 1], [], []>} : vector<2x32xf32>, vector<32x128xf32>, vector<2x128xf32> -> vector<2x128xf32>
    %c0_62 = arith.constant 0 : index
    %c0_63 = arith.constant 0 : index
    %125 = vector.load %arg16[%c0_62, %c0_63] : memref<1x128xf32, #tpu.memory_space<vmem>>, vector<1x128xf32>
    %126 = vector.broadcast %125 : vector<1x128xf32> to vector<2x128xf32>
    %127 = arith.addf %124, %126 : vector<2x128xf32>
    %c0_64 = arith.constant 0 : index
    %c0_65 = arith.constant 0 : index
    %128 = vector.load %arg17[%c0_64, %c0_65] : memref<2x128xf32, #tpu.memory_space<vmem>>, vector<2x128xf32>
    tpu.vector_store %arg17[%c0_64, %c0_65], %127 {strides = array<i32>} : memref<2x128xf32, #tpu.memory_space<vmem>>, vector<2x128xf32>,
    return
  }
}

</mosaic_0001>

<llo_original>
// kernel: gat_mnist_forward.1
$region0: #{gat_mnist_forward.1}
  #allocation0 [shape = 'u32[]', space=smem, size = 0x4, offset = 0x4, fixed_abs, tag = 'smem constant byte address 0x4 - core index']
  #allocation1 [shape = 'u32[144,128]{1,0:T(1,128)}', space=vmem, size = 0x12000, scoped, tag = 'internal scratch']
  %s0 = inlined_call_operand.vmem [shape: f32[16,8], index: 0, kind: input, shape index: {}]
  %s1 = inlined_call_operand.vmem [shape: f32[48,32], index: 1, kind: input, shape index: {}]
  %s2 = inlined_call_operand.vmem [shape: f32[16,48], index: 2, kind: input, shape index: {}]
  %s3 = inlined_call_operand.vmem [shape: f32[2,16], index: 3, kind: input, shape index: {}]
  %s4 = inlined_call_operand.vmem [shape: f32[8,33], index: 4, kind: input, shape index: {}]
  %s5 = inlined_call_operand.vmem [shape: f32[8,33], index: 5, kind: input, shape index: {}]
  %s6 = inlined_call_operand.vmem [shape: f32[1,33], index: 6, kind: input, shape index: {}]
  %s7 = inlined_call_operand.vmem [shape: f32[32,65], index: 7, kind: input, shape index: {}]
  %s8 = inlined_call_operand.vmem [shape: f32[32,65], index: 8, kind: input, shape index: {}]
  %s9 = inlined_call_operand.vmem [shape: f32[1,65], index: 9, kind: input, shape index: {}]
  %s10 = inlined_call_operand.vmem [shape: f32[64,65], index: 10, kind: input, shape index: {}]
  %s11 = inlined_call_operand.vmem [shape: f32[64,65], index: 11, kind: input, shape index: {}]
  %s12 = inlined_call_operand.vmem [shape: f32[1,65], index: 12, kind: input, shape index: {}]
  %s13 = inlined_call_operand.vmem [shape: f32[64,32], index: 13, kind: input, shape index: {}]
  %s14 = inlined_call_operand.vmem [shape: f32[1,32], index: 14, kind: input, shape index: {}]
  %s15 = inlined_call_operand.vmem [shape: f32[32,128], index: 15, kind: input, shape index: {}]
  %s16 = inlined_call_operand.vmem [shape: f32[1,128], index: 16, kind: input, shape index: {}]
  %s17 = inlined_call_operand.hbm [shape: f32[2,128], index: 17, kind: output, shape index: {}]
  %s18 = sld [smem:[#allocation0]]
  $region78: #{gat_mnist_forward.1} parent=0
    _
  %s20 = ssub.s32 1, %s18
  %s21 = scalar_select 0, %s20, %s18
  $region1: #{gat_mnist_forward.1} parent=0
    #allocation2 [shape = 'u8[1024]{0}', space=vmem, size = 0x400, scoped, tag = 'output window, operand 0, single buffered']
    #allocation3 [shape = 's32[1]{0}', space=sflag, size = 0x4, scoped, tag = 'scoped memory for gat_mnist_forward.1']
    %22 = vsyncpa [#allocation3], 0
    // Predicated region
    $region2: #{gat_mnist_forward.1} parent=1 // pred_check
      _
    $region3: #{gat_mnist_forward.1} parent=1 // pred_check_branch
      %24 = sbr.rel (0) target = $region5
    $region4: #{gat_mnist_forward.1} parent=1 // pred_region
      _
    $region5: #{gat_mnist_forward.1} parent=1 // pred_fallthru
      _
    // Predicated region
    $region6: #{gat_mnist_forward.1} parent=1 // pred_check
      _
    $region7: #{gat_mnist_forward.1} parent=1 // pred_check_branch
      %26 = sbr.rel (0) target = $region9
    $region8: #{gat_mnist_forward.1} parent=1 // pred_region
      _
    $region9: #{gat_mnist_forward.1} parent=1 // pred_fallthru
      _
    // Predicated region
    $region10: #{gat_mnist_forward.1} parent=1 // pred_check
      _
    $region11: #{gat_mnist_forward.1} parent=1 // pred_check_branch
      %28 = sbr.rel (0) target = $region13
    $region12: #{gat_mnist_forward.1} parent=1 // pred_region
      _
    $region13: #{gat_mnist_forward.1} parent=1 // pred_fallthru
      _
    // Predicated region
    $region14: #{gat_mnist_forward.1} parent=1 // pred_check
      _
    $region15: #{gat_mnist_forward.1} parent=1 // pred_check_branch
      %30 = sbr.rel (0) target = $region17
    $region16: #{gat_mnist_forward.1} parent=1 // pred_region
      _
    $region17: #{gat_mnist_forward.1} parent=1 // pred_fallthru
      _
    // Predicated region
    $region18: #{gat_mnist_forward.1} parent=1 // pred_check
      _
    $region19: #{gat_mnist_forward.1} parent=1 // pred_check_branch
      %32 = sbr.rel (0) target = $region21
    $region20: #{gat_mnist_forward.1} parent=1 // pred_region
      _
    $region21: #{gat_mnist_forward.1} parent=1 // pred_fallthru
      _
    // Predicated region
    $region22: #{gat_mnist_forward.1} parent=1 // pred_check
      _
    $region23: #{gat_mnist_forward.1} parent=1 // pred_check_branch
      %34 = sbr.rel (0) target = $region25
    $region24: #{gat_mnist_forward.1} parent=1 // pred_region
      _
    $region25: #{gat_mnist_forward.1} parent=1 // pred_fallthru
      _
    // Predicated region
    $region26: #{gat_mnist_forward.1} parent=1 // pred_check
      _
    $region27: #{gat_mnist_forward.1} parent=1 // pred_check_branch
      %36 = sbr.rel (0) target = $region29
    $region28: #{gat_mnist_forward.1} parent=1 // pred_region
      _
    $region29: #{gat_mnist_forward.1} parent=1 // pred_fallthru
      _
    // Predicated region
    $region30: #{gat_mnist_forward.1} parent=1 // pred_check
      _
    $region31: #{gat_mnist_forward.1} parent=1 // pred_check_branch
      %38 = sbr.rel (0) target = $region33
    $region32: #{gat_mnist_forward.1} parent=1 // pred_region
      _
    $region33: #{gat_mnist_forward.1} parent=1 // pred_fallthru
      _
    // Predicated region
    $region34: #{gat_mnist_forward.1} parent=1 // pred_check
      _
    $region35: #{gat_mnist_forward.1} parent=1 // pred_check_branch
      %40 = sbr.rel (0) target = $region37
    $region36: #{gat_mnist_forward.1} parent=1 // pred_region
      _
    $region37: #{gat_mnist_forward.1} parent=1 // pred_fallthru
      _
    // Predicated region
    $region38: #{gat_mnist_forward.1} parent=1 // pred_check
      _
    $region39: #{gat_mnist_forward.1} parent=1 // pred_check_branch
      %42 = sbr.rel (0) target = $region41
    $region40: #{gat_mnist_forward.1} parent=1 // pred_region
      _
    $region41: #{gat_mnist_forward.1} parent=1 // pred_fallthru
      _
    // Predicated region
    $region42: #{gat_mnist_forward.1} parent=1 // pred_check
      _
    $region43: #{gat_mnist_forward.1} parent=1 // pred_check_branch
      %44 = sbr.rel (0) target = $region45
    $region44: #{gat_mnist_forward.1} parent=1 // pred_region
      _
    $region45: #{gat_mnist_forward.1} parent=1 // pred_fallthru
      _
    // Predicated region
    $region46: #{gat_mnist_forward.1} parent=1 // pred_check
      _
    $region47: #{gat_mnist_forward.1} parent=1 // pred_check_branch
      %46 = sbr.rel (0) target = $region49
    $region48: #{gat_mnist_forward.1} parent=1 // pred_region
      _
    $region49: #{gat_mnist_forward.1} parent=1 // pred_fallthru
      _
    // Predicated region
    $region50: #{gat_mnist_forward.1} parent=1 // pred_check
      _
    $region51: #{gat_mnist_forward.1} parent=1 // pred_check_branch
      %48 = sbr.rel (0) target = $region53
    $region52: #{gat_mnist_forward.1} parent=1 // pred_region
      _
    $region53: #{gat_mnist_forward.1} parent=1 // pred_fallthru
      _
    // Predicated region
    $region54: #{gat_mnist_forward.1} parent=1 // pred_check
      _
    $region55: #{gat_mnist_forward.1} parent=1 // pred_check_branch
      %50 = sbr.rel (0) target = $region57
    $region56: #{gat_mnist_forward.1} parent=1 // pred_region
      _
    $region57: #{gat_mnist_forward.1} parent=1 // pred_fallthru
      _
    // Predicated region
    $region58: #{gat_mnist_forward.1} parent=1 // pred_check
      _
    $region59: #{gat_mnist_forward.1} parent=1 // pred_check_branch
      %52 = sbr.rel (0) target = $region61
    $region60: #{gat_mnist_forward.1} parent=1 // pred_region
      _
    $region61: #{gat_mnist_forward.1} parent=1 // pred_fallthru
      _
    // Predicated region
    $region62: #{gat_mnist_forward.1} parent=1 // pred_check
      _
    $region63: #{gat_mnist_forward.1} parent=1 // pred_check_branch
      %54 = sbr.rel (0) target = $region65
    $region64: #{gat_mnist_forward.1} parent=1 // pred_region
      _
    $region65: #{gat_mnist_forward.1} parent=1 // pred_fallthru
      _
    // Predicated region
    $region66: #{gat_mnist_forward.1} parent=1 // pred_check
      _
    $region67: #{gat_mnist_forward.1} parent=1 // pred_check_branch
      %56 = sbr.rel (0) target = $region69
    $region68: #{gat_mnist_forward.1} parent=1 // pred_region
      _
    $region69: #{gat_mnist_forward.1} parent=1 // pred_fallthru
      _
    %v57 = vld [vmem:[%s1] sm:$0xff]
    %v58 = vld [vmem:[%s1 + $0x8] sm:$0xff]
    %v59 = vld [vmem:[%s1 + $0x10] sm:$0xff]
    %v60 = vld [vmem:[%s1 + $0x18] sm:$0xff]
    %v61 = vld [vmem:[%s1 + $0x20] sm:$0xff]
    %v62 = vld [vmem:[%s1 + $0x28] sm:$0xff]
    %v63 = vld [vmem:[%s2] sm:$0xff]
    %v64 = vld [vmem:[%s2 + $0x8] sm:$0xff]
    %v65 = vld [vmem:[%s0] sm:$0xff]
    %v66 = vld [vmem:[%s0 + $0x8] sm:$0xff]
    %v67 = vld [vmem:[%s4] sm:$0xff]
    %vm68 = vcmask 64512
    %v70 = vsel %vm68, %v65, 0
    %v73 = vsel %vm68, %v66, 0
    %75 = vmatprep.subr.mxu0 0.0
    %76 = vmatpush1.msra.mxu0 %v67
    %77 = vmatprep.subr.mxu0 0.0
    %78 = vmatpush1.msra.mxu0 0.0
    %79 = vmatprep.subr.mxu0 0.0
    %80 = vmatpush1.msra.mxu0 0.0
    %81 = vmatprep.subr.mxu0 0.0
    %82 = vmatpush1.msra.mxu0 0.0
    %83 = vmatprep.subr.mxu0 0.0
    %84 = vmatpush1.msra.mxu0 0.0
    %85 = vmatprep.subr.mxu0 0.0
    %86 = vmatpush1.msra.mxu0 0.0
    %87 = vmatprep.subr.mxu0 0.0
    %88 = vmatpush1.msra.mxu0 0.0
    %89 = vmatprep.subr.mxu0 0.0
    %90 = vmatpush1.msra.mxu0 0.0
    %91 = vmatprep.subr.mxu0 0.0
    %92 = vmatpush1.msra.mxu0 0.0
    %93 = vmatprep.subr.mxu0 0.0
    %94 = vmatpush1.msra.mxu0 0.0
    %95 = vmatprep.subr.mxu0 0.0
    %96 = vmatpush1.msra.mxu0 0.0
    %97 = vmatprep.subr.mxu0 0.0
    %98 = vmatpush1.msra.mxu0 0.0
    %99 = vmatprep.subr.mxu0 0.0
    %100 = vmatpush1.msra.mxu0 0.0
    %101 = vmatprep.subr.mxu0 0.0
    %102 = vmatpush1.msra.mxu0 0.0
    %103 = vmatprep.subr.mxu0 0.0
    %104 = vmatpush1.msra.mxu0 0.0
    %105 = vmatprep.subr.mxu0 0.0
    %106 = vmatpush1.msra.mxu0 0.0
    %107 = vmatprep.subr.mxu0 0.0
    %108 = vmatpush1.msra.mxu0 0.0
    %109 = vmatprep.subr.mxu0 0.0
    %110 = vmatpush1.msra.mxu0 0.0
    %111 = vmatprep.subr.mxu0 0.0
    %112 = vmatpush1.msra.mxu0 0.0
    %113 = vmatprep.subr.mxu0 0.0
    %114 = vmatpush1.msra.mxu0 0.0
    %115 = vmatprep.subr.mxu0 0.0
    %116 = vmatpush1.msra.mxu0 0.0
    %117 = vmatprep.subr.mxu0 0.0
    %118 = vmatpush1.msra.mxu0 0.0
    %119 = vmatprep.subr.mxu0 0.0
    %120 = vmatpush1.msra.mxu0 0.0
    %121 = vmatprep.subr.mxu0 0.0
    %122 = vmatpush1.msra.mxu0 0.0
    %123 = vmatprep.subr.mxu0 0.0
    %124 = vmatpush1.msra.mxu0 0.0
    %125 = vmatprep.subr.mxu0 0.0
    %126 = vmatpush1.msra.mxu0 0.0
    %127 = vmatprep.subr.mxu0 0.0
    %128 = vmatpush1.msra.mxu0 0.0
    %129 = vmatprep.subr.mxu0 0.0
    %130 = vmatpush1.msra.mxu0 0.0
    %131 = vmatprep.subr.mxu0 0.0
    %132 = vmatpush1.msra.mxu0 0.0
    %133 = vmatprep.subr.mxu0 0.0
    %134 = vmatpush1.msra.mxu0 0.0
    %135 = vmatprep.subr.mxu0 0.0
    %136 = vmatpush1.msra.mxu0 0.0
    %137 = vmatprep.subr.mxu0 0.0
    %138 = vmatpush1.msra.mxu0 0.0
    %139 = vmatprep.mubr.f32.mxu0 0.0
    %140 = vmatmul.mubr.f32.gmra.mrb[0].mxu0 %v70
    %v141 = vpop.f32.mrb[0].mxu0
    %v142 = vadd.f32 0.0, %v141
    %v143 = vpop.f32.mrb[0].mxu0
    %144 = vmatprep.mubr.f32.mxu0 0.0
    %145 = vmatmul.mubr.f32.gmra.mrb[0].mxu0 %v73
    %v146 = vpop.f32.mrb[0].mxu0
    %v147 = vadd.f32 0.0, %v146
    %v148 = vpop.f32.mrb[0].mxu0
    %149 = vdwg.mxu0
    %v150 = vld [vmem:[%s5] sm:$0xff]
    %151 = vmatprep.subr.mxu0 0.0
    %152 = vmatpush1.msra.mxu0 %v150
    %153 = vmatprep.subr.mxu0 0.0
    %154 = vmatpush1.msra.mxu0 0.0
    %155 = vmatprep.subr.mxu0 0.0
    %156 = vmatpush1.msra.mxu0 0.0
    %157 = vmatprep.subr.mxu0 0.0
    %158 = vmatpush1.msra.mxu0 0.0
    %159 = vmatprep.subr.mxu0 0.0
    %160 = vmatpush1.msra.mxu0 0.0
    %161 = vmatprep.subr.mxu0 0.0
    %162 = vmatpush1.msra.mxu0 0.0
    %163 = vmatprep.subr.mxu0 0.0
    %164 = vmatpush1.msra.mxu0 0.0
    %165 = vmatprep.subr.mxu0 0.0
    %166 = vmatpush1.msra.mxu0 0.0
    %167 = vmatprep.subr.mxu0 0.0
    %168 = vmatpush1.msra.mxu0 0.0
    %169 = vmatprep.subr.mxu0 0.0
    %170 = vmatpush1.msra.mxu0 0.0
    %171 = vmatprep.subr.mxu0 0.0
    %172 = vmatpush1.msra.mxu0 0.0
    %173 = vmatprep.subr.mxu0 0.0
    %174 = vmatpush1.msra.mxu0 0.0
    %175 = vmatprep.subr.mxu0 0.0
    %176 = vmatpush1.msra.mxu0 0.0
    %177 = vmatprep.subr.mxu0 0.0
    %178 = vmatpush1.msra.mxu0 0.0
    %179 = vmatprep.subr.mxu0 0.0
    %180 = vmatpush1.msra.mxu0 0.0
    %181 = vmatprep.subr.mxu0 0.0
    %182 = vmatpush1.msra.mxu0 0.0
    %183 = vmatprep.subr.mxu0 0.0
    %184 = vmatpush1.msra.mxu0 0.0
    %185 = vmatprep.subr.mxu0 0.0
    %186 = vmatpush1.msra.mxu0 0.0
    %187 = vmatprep.subr.mxu0 0.0
    %188 = vmatpush1.msra.mxu0 0.0
    %189 = vmatprep.subr.mxu0 0.0
    %190 = vmatpush1.msra.mxu0 0.0
    %191 = vmatprep.subr.mxu0 0.0
    %192 = vmatpush1.msra.mxu0 0.0
    %193 = vmatprep.subr.mxu0 0.0
    %194 = vmatpush1.msra.mxu0 0.0
    %195 = vmatprep.subr.mxu0 0.0
    %196 = vmatpush1.msra.mxu0 0.0
    %197 = vmatprep.subr.mxu0 0.0
    %198 = vmatpush1.msra.mxu0 0.0
    %199 = vmatprep.subr.mxu0 0.0
    %200 = vmatpush1.msra.mxu0 0.0
    %201 = vmatprep.subr.mxu0 0.0
    %202 = vmatpush1.msra.mxu0 0.0
    %203 = vmatprep.subr.mxu0 0.0
    %204 = vmatpush1.msra.mxu0 0.0
    %205 = vmatprep.subr.mxu0 0.0
    %206 = vmatpush1.msra.mxu0 0.0
    %207 = vmatprep.subr.mxu0 0.0
    %208 = vmatpush1.msra.mxu0 0.0
    %209 = vmatprep.subr.mxu0 0.0
    %210 = vmatpush1.msra.mxu0 0.0
    %211 = vmatprep.subr.mxu0 0.0
    %212 = vmatpush1.msra.mxu0 0.0
    %213 = vmatprep.subr.mxu0 0.0
    %214 = vmatpush1.msra.mxu0 0.0
    %215 = vmatprep.mubr.f32.mxu0 0.0
    %216 = vmatmul.mubr.f32.gmra.mrb[0].mxu0 %v70
    %v217 = vpop.f32.mrb[0].mxu0
    %v218 = vadd.f32 0.0, %v217
    %v219 = vpop.f32.mrb[0].mxu0
    %220 = vmatprep.mubr.f32.mxu0 0.0
    %221 = vmatmul.mubr.f32.gmra.mrb[0].mxu0 %v73
    %v222 = vpop.f32.mrb[0].mxu0
    %v223 = vadd.f32 0.0, %v222
    %v224 = vpop.f32.mrb[0].mxu0
    %225 = vdwg.mxu0
    %vm226 = vcmask 269568
    %v227 = vsel %vm226, %v142, -inf
    %v228 = vsel %vm226, %v147, -inf
    %v229 = vmax.f32 %v227, %v228
    %v230 = vrot.slane %v229, 4
    %v231 = vmax.f32 %v229, %v230
    %v232 = vrot.slane %v231, 2
    %v233 = vmax.f32 %v231, %v232
    %v234 = vrot.slane %v233, 1
    %v235 = vmax.f32 %v233, %v234
    %v236 = vsel %vm226, %v218, -inf
    %v237 = vsel %vm226, %v223, -inf
    %v238 = vmax.f32 %v236, %v237
    %v239 = vrot.slane %v238, 4
    %v240 = vmax.f32 %v238, %v239
    %v241 = vrot.slane %v240, 2
    %v242 = vmax.f32 %v240, %v241
    %v243 = vrot.slane %v242, 1
    %v244 = vmax.f32 %v242, %v243
    %v245 = vadd.f32 %v235, %v244
    %vm246 = vcmask 261120
    %v248 = vsel %vm246, %v57, 0
    %v251 = vsel %vm246, %v58, 0
    %v254 = vsel %vm246, %v59, 0
    %v257 = vsel %vm246, %v60, 0
    %v260 = vsel %vm246, %v61, 0
    %v263 = vsel %vm246, %v62, 0
    %265 = vmatprep.subr.mxu0 0.0
    %266 = vmatpush1.msra.mxu0 %v142
    %267 = vmatprep.subr.mxu0 0.0
    %268 = vmatpush1.msra.mxu0 %v147
    %269 = vmatprep.subr.mxu0 0.0
    %270 = vmatpush1.msra.mxu0 %v218
    %271 = vmatprep.subr.mxu0 0.0
    %272 = vmatpush1.msra.mxu0 %v223
    %273 = vmatprep.subr.mxu0 0.0
    %274 = vmatpush1.msra.mxu0 0.0
    %275 = vmatprep.subr.mxu0 0.0
    %276 = vmatpush1.msra.mxu0 0.0
    %277 = vmatprep.subr.mxu0 0.0
    %278 = vmatpush1.msra.mxu0 0.0
    %279 = vmatprep.subr.mxu0 0.0
    %280 = vmatpush1.msra.mxu0 0.0
    %281 = vmatprep.subr.mxu0 0.0
    %282 = vmatpush1.msra.mxu0 0.0
    %283 = vmatprep.subr.mxu0 0.0
    %284 = vmatpush1.msra.mxu0 0.0
    %285 = vmatprep.subr.mxu0 0.0
    %286 = vmatpush1.msra.mxu0 0.0
    %287 = vmatprep.subr.mxu0 0.0
    %288 = vmatpush1.msra.mxu0 0.0
    %289 = vmatprep.subr.mxu0 0.0
    %290 = vmatpush1.msra.mxu0 0.0
    %291 = vmatprep.subr.mxu0 0.0
    %292 = vmatpush1.msra.mxu0 0.0
    %293 = vmatprep.subr.mxu0 0.0
    %294 = vmatpush1.msra.mxu0 0.0
    %295 = vmatprep.subr.mxu0 0.0
    %296 = vmatpush1.msra.mxu0 0.0
    %297 = vmatprep.subr.mxu0 0.0
    %298 = vmatpush1.msra.mxu0 0.0
    %299 = vmatprep.subr.mxu0 0.0
    %300 = vmatpush1.msra.mxu0 0.0
    %301 = vmatprep.subr.mxu0 0.0
    %302 = vmatpush1.msra.mxu0 0.0
    %303 = vmatprep.subr.mxu0 0.0
    %304 = vmatpush1.msra.mxu0 0.0
    %305 = vmatprep.subr.mxu0 0.0
    %306 = vmatpush1.msra.mxu0 0.0
    %307 = vmatprep.subr.mxu0 0.0
    %308 = vmatpush1.msra.mxu0 0.0
    %309 = vmatprep.subr.mxu0 0.0
    %310 = vmatpush1.msra.mxu0 0.0
    %311 = vmatprep.subr.mxu0 0.0
    %312 = vmatpush1.msra.mxu0 0.0
    %313 = vmatprep.subr.mxu0 0.0
    %314 = vmatpush1.msra.mxu0 0.0
    %315 = vmatprep.subr.mxu0 0.0
    %316 = vmatpush1.msra.mxu0 0.0
    %317 = vmatprep.subr.mxu0 0.0
    %318 = vmatpush1.msra.mxu0 0.0
    %319 = vmatprep.subr.mxu0 0.0
    %320 = vmatpush1.msra.mxu0 0.0
    %321 = vmatprep.subr.mxu0 0.0
    %322 = vmatpush1.msra.mxu0 0.0
    %323 = vmatprep.subr.mxu0 0.0
    %324 = vmatpush1.msra.mxu0 0.0
    %325 = vmatprep.subr.mxu0 0.0
    %326 = vmatpush1.msra.mxu0 0.0
    %327 = vmatprep.subr.mxu0 0.0
    %328 = vmatpush1.msra.mxu0 0.0
    %329 = vmatprep.mubr.f32.mxu0 0.0
    %330 = vmatmul.mubr.f32.gmra.mrb[0].mxu0 %v248
    %v331 = vpop.f32.mrb[0].mxu0
    %v332 = vadd.f32 0.0, %v331
    %v333 = vpop.f32.mrb[0].mxu0
    %334 = vmatprep.mubr.f32.mxu0 0.0
    %335 = vmatmul.mubr.f32.gmra.mrb[0].mxu0 %v251
    %v336 = vpop.f32.mrb[0].mxu0
    %v337 = vadd.f32 0.0, %v336
    %v338 = vpop.f32.mrb[0].mxu0
    %339 = vmatprep.mubr.f32.mxu0 0.0
    %340 = vmatmul.mubr.f32.gmra.mrb[0].mxu0 %v254
    %v341 = vpop.f32.mrb[0].mxu0
    %v342 = vadd.f32 0.0, %v341
    %v343 = vpop.f32.mrb[0].mxu0
    %344 = vmatprep.mubr.f32.mxu0 0.0
    %345 = vmatmul.mubr.f32.gmra.mrb[0].mxu0 %v257
    %v346 = vpop.f32.mrb[0].mxu0
    %v347 = vadd.f32 0.0, %v346
    %v348 = vpop.f32.mrb[0].mxu0
    %349 = vmatprep.mubr.f32.mxu0 0.0
    %350 = vmatmul.mubr.f32.gmra.mrb[0].mxu0 %v260
    %v351 = vpop.f32.mrb[0].mxu0
    %v352 = vadd.f32 0.0, %v351
    %v353 = vpop.f32.mrb[0].mxu0
    %354 = vmatprep.mubr.f32.mxu0 0.0
    %355 = vmatmul.mubr.f32.gmra.mrb[0].mxu0 %v263
    %v356 = vpop.f32.mrb[0].mxu0
    %v357 = vadd.f32 0.0, %v356
    %v358 = vpop.f32.mrb[0].mxu0
    %359 = vdwg.mxu0
    %v360 = vsub.f32 %v332, %v245
    %v361 = vsub.f32 %v337, %v245
    %v362 = vsub.f32 %v342, %v245
    %v363 = vsub.f32 %v347, %v245
    %v364 = vsub.f32 %v352, %v245
    %v365 = vsub.f32 %v357, %v245
    %v366 = vmul.f32 %v360, 1.442695
    %v367 = vpow.pop %v366
    %v368 = vmul.f32 %v361, 1.442695
    %v369 = vpow.pop %v368
    %v370 = vmul.f32 %v362, 1.442695
    %v371 = vpow.pop %v370
    %v372 = vmul.f32 %v363, 1.442695
    %v373 = vpow.pop %v372
    %v374 = vmul.f32 %v364, 1.442695
    %v375 = vpow.pop %v374
    %v376 = vmul.f32 %v365, 1.442695
    %v377 = vpow.pop %v376
    %v378 = vlaneseq
    %v379 = vand.u32 %v378, 127
    %vm380 = vcmp.lt.s32.totalorder %v379, 32
    %v381 = vld [vmem:[%s6] sm:$0x1]
    %v383 = vlaneseq
    %v384 = vshrl.u32 %v383, 7
    %v385 = vsub.s32 0, %v384
    %v386 = vrot.slane %v381, %v385
    %v388 = vadd.f32 %v332, %v386
    %v389 = vadd.f32 %v337, %v386
    %v390 = vadd.f32 %v342, %v386
    %v391 = vadd.f32 %v347, %v386
    %v392 = vadd.f32 %v352, %v386
    %v393 = vadd.f32 %v357, %v386
    %v394 = vmax.f32 %v388, 0.0
    %v395 = vmax.f32 %v389, 0.0
    %v396 = vmax.f32 %v390, 0.0
    %v397 = vmax.f32 %v391, 0.0
    %v398 = vmax.f32 %v392, 0.0
    %v399 = vmax.f32 %v393, 0.0
    %v400 = vsel %vm380, %v394, 1.0
    %v401 = vsel %vm380, %v395, 1.0
    %v402 = vsel %vm380, %v396, 1.0
    %v403 = vsel %vm380, %v397, 1.0
    %v404 = vsel %vm380, %v398, 1.0
    %v405 = vsel %vm380, %v399, 1.0
    %407 = vset.pattern.permute.xlu0 32
    %408 = vperm.xlu0 %407, %v367
    %v409 = vpop.permute.xlu0 %408
    %412 = vset.pattern.permute.xlu0 32
    %413 = vperm.xlu0 %412, %v369
    %v414 = vpop.permute.xlu0 %413
    %417 = vset.pattern.permute.xlu0 32
    %418 = vperm.xlu0 %417, %v371
    %v419 = vpop.permute.xlu0 %418
    %422 = vset.pattern.permute.xlu0 32
    %423 = vperm.xlu0 %422, %v373
    %v424 = vpop.permute.xlu0 %423
    %427 = vset.pattern.permute.xlu0 32
    %428 = vperm.xlu0 %427, %v375
    %v429 = vpop.permute.xlu0 %428
    %432 = vset.pattern.permute.xlu0 32
    %433 = vperm.xlu0 %432, %v377
    %v434 = vpop.permute.xlu0 %433
    %v436 = vmul.f32 %v400, %v409
    %v437 = vmul.f32 %v401, %v414
    %v438 = vmul.f32 %v402, %v419
    %v439 = vmul.f32 %v403, %v424
    %v440 = vmul.f32 %v404, %v429
    %v441 = vmul.f32 %v405, %v434
    %vm442 = vcmask 392192
    %v444 = vsel %vm442, %v63, 0
    %v447 = vsel %vm442, %v64, 0
    %449 = vmatprep.subr.mxu0 0.0
    %450 = vmatpush1.msra.mxu0 %v436
    %451 = vmatprep.subr.mxu0 0.0
    %452 = vmatpush1.msra.mxu0 %v437
    %453 = vmatprep.subr.mxu0 0.0
    %454 = vmatpush1.msra.mxu0 %v438
    %455 = vmatprep.subr.mxu0 0.0
    %456 = vmatpush1.msra.mxu0 %v439
    %457 = vmatprep.subr.mxu0 0.0
    %458 = vmatpush1.msra.mxu0 %v440
    %459 = vmatprep.subr.mxu0 0.0
    %460 = vmatpush1.msra.mxu0 %v441
    %461 = vmatprep.subr.mxu0 0.0
    %462 = vmatpush1.msra.mxu0 0.0
    %463 = vmatprep.subr.mxu0 0.0
    %464 = vmatpush1.msra.mxu0 0.0
    %465 = vmatprep.subr.mxu0 0.0
    %466 = vmatpush1.msra.mxu0 0.0
    %467 = vmatprep.subr.mxu0 0.0
    %468 = vmatpush1.msra.mxu0 0.0
    %469 = vmatprep.subr.mxu0 0.0
    %470 = vmatpush1.msra.mxu0 0.0
    %471 = vmatprep.subr.mxu0 0.0
    %472 = vmatpush1.msra.mxu0 0.0
    %473 = vmatprep.subr.mxu0 0.0
    %474 = vmatpush1.msra.mxu0 0.0
    %475 = vmatprep.subr.mxu0 0.0
    %476 = vmatpush1.msra.mxu0 0.0
    %477 = vmatprep.subr.mxu0 0.0
    %478 = vmatpush1.msra.mxu0 0.0
    %479 = vmatprep.subr.mxu0 0.0
    %480 = vmatpush1.msra.mxu0 0.0
    %481 = vmatprep.subr.mxu0 0.0
    %482 = vmatpush1.msra.mxu0 0.0
    %483 = vmatprep.subr.mxu0 0.0
    %484 = vmatpush1.msra.mxu0 0.0
    %485 = vmatprep.subr.mxu0 0.0
    %486 = vmatpush1.msra.mxu0 0.0
    %487 = vmatprep.subr.mxu0 0.0
    %488 = vmatpush1.msra.mxu0 0.0
    %489 = vmatprep.subr.mxu0 0.0
    %490 = vmatpush1.msra.mxu0 0.0
    %491 = vmatprep.subr.mxu0 0.0
    %492 = vmatpush1.msra.mxu0 0.0
    %493 = vmatprep.subr.mxu0 0.0
    %494 = vmatpush1.msra.mxu0 0.0
    %495 = vmatprep.subr.mxu0 0.0
    %496 = vmatpush1.msra.mxu0 0.0
    %497 = vmatprep.subr.mxu0 0.0
    %498 = vmatpush1.msra.mxu0 0.0
    %499 = vmatprep.subr.mxu0 0.0
    %500 = vmatpush1.msra.mxu0 0.0
    %501 = vmatprep.subr.mxu0 0.0
    %502 = vmatpush1.msra.mxu0 0.0
    %503 = vmatprep.subr.mxu0 0.0
    %504 = vmatpush1.msra.mxu0 0.0
    %505 = vmatprep.subr.mxu0 0.0
    %506 = vmatpush1.msra.mxu0 0.0
    %507 = vmatprep.subr.mxu0 0.0
    %508 = vmatpush1.msra.mxu0 0.0
    %509 = vmatprep.subr.mxu0 0.0
    %510 = vmatpush1.msra.mxu0 0.0
    %511 = vmatprep.subr.mxu0 0.0
    %512 = vmatpush1.msra.mxu0 0.0
    %513 = vmatprep.mubr.f32.mxu0 0.0
    %514 = vmatmul.mubr.f32.gmra.mrb[0].mxu0 %v444
    %v515 = vpop.f32.mrb[0].mxu0
    %v516 = vadd.f32 0.0, %v515
    %v517 = vpop.f32.mrb[0].mxu0
    %518 = vmatprep.mubr.f32.mxu0 0.0
    %519 = vmatmul.mubr.f32.gmra.mrb[0].mxu0 %v447
    %v520 = vpop.f32.mrb[0].mxu0
    %v521 = vadd.f32 0.0, %v520
    %v522 = vpop.f32.mrb[0].mxu0
    %523 = vdwg.mxu0
    %v524 = vadd.f32 %v516, 1e-06
    %v525 = vadd.f32 %v521, 1e-06
    %v526 = vrcp.pop %v524
    %v527 = vrcp.pop %v525
    %529 = vset.pattern.permute.xlu0 32
    %530 = vperm.xlu0 %529, %v526
    %v531 = vpop.permute.xlu0 %530
    %534 = vset.pattern.permute.xlu0 32
    %535 = vperm.xlu0 %534, %v527
    %v536 = vpop.permute.xlu0 %535
    %v538 = vmul.f32 %v516, %v531
    %v539 = vmul.f32 %v521, %v536
    %v540 = vld [vmem:[%s7] sm:$0xff]
    %v541 = vld [vmem:[%s7 + $0x8] sm:$0xff]
    %v542 = vld [vmem:[%s7 + $0x10] sm:$0xff]
    %v543 = vld [vmem:[%s7 + $0x18] sm:$0xff]
    %v545 = vsel %vm246, %v538, 0
    %v548 = vsel %vm246, %v539, 0
    %550 = vmatprep.subr.mxu0 0.0
    %551 = vmatpush1.msra.mxu0 %v540
    %552 = vmatprep.subr.mxu0 0.0
    %553 = vmatpush1.msra.mxu0 %v541
    %554 = vmatprep.subr.mxu0 0.0
    %555 = vmatpush1.msra.mxu0 %v542
    %556 = vmatprep.subr.mxu0 0.0
    %557 = vmatpush1.msra.mxu0 %v543
    %558 = vmatprep.subr.mxu0 0.0
    %559 = vmatpush1.msra.mxu0 0.0
    %560 = vmatprep.subr.mxu0 0.0
    %561 = vmatpush1.msra.mxu0 0.0
    %562 = vmatprep.subr.mxu0 0.0
    %563 = vmatpush1.msra.mxu0 0.0
    %564 = vmatprep.subr.mxu0 0.0
    %565 = vmatpush1.msra.mxu0 0.0
    %566 = vmatprep.subr.mxu0 0.0
    %567 = vmatpush1.msra.mxu0 0.0
    %568 = vmatprep.subr.mxu0 0.0
    %569 = vmatpush1.msra.mxu0 0.0
    %570 = vmatprep.subr.mxu0 0.0
    %571 = vmatpush1.msra.mxu0 0.0
    %572 = vmatprep.subr.mxu0 0.0
    %573 = vmatpush1.msra.mxu0 0.0
    %574 = vmatprep.subr.mxu0 0.0
    %575 = vmatpush1.msra.mxu0 0.0
    %576 = vmatprep.subr.mxu0 0.0
    %577 = vmatpush1.msra.mxu0 0.0
    %578 = vmatprep.subr.mxu0 0.0
    %579 = vmatpush1.msra.mxu0 0.0
    %580 = vmatprep.subr.mxu0 0.0
    %581 = vmatpush1.msra.mxu0 0.0
    %582 = vmatprep.subr.mxu0 0.0
    %583 = vmatpush1.msra.mxu0 0.0
    %584 = vmatprep.subr.mxu0 0.0
    %585 = vmatpush1.msra.mxu0 0.0
    %586 = vmatprep.subr.mxu0 0.0
    %587 = vmatpush1.msra.mxu0 0.0
    %588 = vmatprep.subr.mxu0 0.0
    %589 = vmatpush1.msra.mxu0 0.0
    %590 = vmatprep.subr.mxu0 0.0
    %591 = vmatpush1.msra.mxu0 0.0
    %592 = vmatprep.subr.mxu0 0.0
    %593 = vmatpush1.msra.mxu0 0.0
    %594 = vmatprep.subr.mxu0 0.0
    %595 = vmatpush1.msra.mxu0 0.0
    %596 = vmatprep.subr.mxu0 0.0
    %597 = vmatpush1.msra.mxu0 0.0
    %598 = vmatprep.subr.mxu0 0.0
    %599 = vmatpush1.msra.mxu0 0.0
    %600 = vmatprep.subr.mxu0 0.0
    %601 = vmatpush1.msra.mxu0 0.0
    %602 = vmatprep.subr.mxu0 0.0
    %603 = vmatpush1.msra.mxu0 0.0
    %604 = vmatprep.subr.mxu0 0.0
    %605 = vmatpush1.msra.mxu0 0.0
    %606 = vmatprep.subr.mxu0 0.0
    %607 = vmatpush1.msra.mxu0 0.0
    %608 = vmatprep.subr.mxu0 0.0
    %609 = vmatpush1.msra.mxu0 0.0
    %610 = vmatprep.subr.mxu0 0.0
    %611 = vmatpush1.msra.mxu0 0.0
    %612 = vmatprep.subr.mxu0 0.0
    %613 = vmatpush1.msra.mxu0 0.0
    %614 = vmatprep.mubr.f32.mxu0 0.0
    %615 = vmatmul.mubr.f32.gmra.mrb[0].mxu0 %v545
    %v616 = vpop.f32.mrb[0].mxu0
    %v617 = vadd.f32 0.0, %v616
    %v618 = vpop.f32.mrb[0].mxu0
    %619 = vmatprep.mubr.f32.mxu0 0.0
    %620 = vmatmul.mubr.f32.gmra.mrb[0].mxu0 %v548
    %v621 = vpop.f32.mrb[0].mxu0
    %v622 = vadd.f32 0.0, %v621
    %v623 = vpop.f32.mrb[0].mxu0
    %624 = vdwg.mxu0
    %v625 = vld [vmem:[%s8] sm:$0xff]
    %v626 = vld [vmem:[%s8 + $0x8] sm:$0xff]
    %v627 = vld [vmem:[%s8 + $0x10] sm:$0xff]
    %v628 = vld [vmem:[%s8 + $0x18] sm:$0xff]
    %629 = vmatprep.subr.mxu0 0.0
    %630 = vmatpush1.msra.mxu0 %v625
    %631 = vmatprep.subr.mxu0 0.0
    %632 = vmatpush1.msra.mxu0 %v626
    %633 = vmatprep.subr.mxu0 0.0
    %634 = vmatpush1.msra.mxu0 %v627
    %635 = vmatprep.subr.mxu0 0.0
    %636 = vmatpush1.msra.mxu0 %v628
    %637 = vmatprep.subr.mxu0 0.0
    %638 = vmatpush1.msra.mxu0 0.0
    %639 = vmatprep.subr.mxu0 0.0
    %640 = vmatpush1.msra.mxu0 0.0
    %641 = vmatprep.subr.mxu0 0.0
    %642 = vmatpush1.msra.mxu0 0.0
    %643 = vmatprep.subr.mxu0 0.0
    %644 = vmatpush1.msra.mxu0 0.0
    %645 = vmatprep.subr.mxu0 0.0
    %646 = vmatpush1.msra.mxu0 0.0
    %647 = vmatprep.subr.mxu0 0.0
    %648 = vmatpush1.msra.mxu0 0.0
    %649 = vmatprep.subr.mxu0 0.0
    %650 = vmatpush1.msra.mxu0 0.0
    %651 = vmatprep.subr.mxu0 0.0
    %652 = vmatpush1.msra.mxu0 0.0
    %653 = vmatprep.subr.mxu0 0.0
    %654 = vmatpush1.msra.mxu0 0.0
    %655 = vmatprep.subr.mxu0 0.0
    %656 = vmatpush1.msra.mxu0 0.0
    %657 = vmatprep.subr.mxu0 0.0
    %658 = vmatpush1.msra.mxu0 0.0
    %659 = vmatprep.subr.mxu0 0.0
    %660 = vmatpush1.msra.mxu0 0.0
    %661 = vmatprep.subr.mxu0 0.0
    %662 = vmatpush1.msra.mxu0 0.0
    %663 = vmatprep.subr.mxu0 0.0
    %664 = vmatpush1.msra.mxu0 0.0
    %665 = vmatprep.subr.mxu0 0.0
    %666 = vmatpush1.msra.mxu0 0.0
    %667 = vmatprep.subr.mxu0 0.0
    %668 = vmatpush1.msra.mxu0 0.0
    %669 = vmatprep.subr.mxu0 0.0
    %670 = vmatpush1.msra.mxu0 0.0
    %671 = vmatprep.subr.mxu0 0.0
    %672 = vmatpush1.msra.mxu0 0.0
    %673 = vmatprep.subr.mxu0 0.0
    %674 = vmatpush1.msra.mxu0 0.0
    %675 = vmatprep.subr.mxu0 0.0
    %676 = vmatpush1.msra.mxu0 0.0
    %677 = vmatprep.subr.mxu0 0.0
    %678 = vmatpush1.msra.mxu0 0.0
    %679 = vmatprep.subr.mxu0 0.0
    %680 = vmatpush1.msra.mxu0 0.0
    %681 = vmatprep.subr.mxu0 0.0
    %682 = vmatpush1.msra.mxu0 0.0
    %683 = vmatprep.subr.mxu0 0.0
    %684 = vmatpush1.msra.mxu0 0.0
    %685 = vmatprep.subr.mxu0 0.0
    %686 = vmatpush1.msra.mxu0 0.0
    %687 = vmatprep.subr.mxu0 0.0
    %688 = vmatpush1.msra.mxu0 0.0
    %689 = vmatprep.subr.mxu0 0.0
    %690 = vmatpush1.msra.mxu0 0.0
    %691 = vmatprep.subr.mxu0 0.0
    %692 = vmatpush1.msra.mxu0 0.0
    %693 = vmatprep.mubr.f32.mxu0 0.0
    %694 = vmatmul.mubr.f32.gmra.mrb[0].mxu0 %v545
    %v695 = vpop.f32.mrb[0].mxu0
    %v696 = vadd.f32 0.0, %v695
    %v697 = vpop.f32.mrb[0].mxu0
    %698 = vmatprep.mubr.f32.mxu0 0.0
    %699 = vmatmul.mubr.f32.gmra.mrb[0].mxu0 %v548
    %v700 = vpop.f32.mrb[0].mxu0
    %v701 = vadd.f32 0.0, %v700
    %v702 = vpop.f32.mrb[0].mxu0
    %703 = vdwg.mxu0
    %vm704 = vcmask 531968
    %v705 = vsel %vm704, %v617, -inf
    %v706 = vsel %vm704, %v622, -inf
    %v707 = vmax.f32 %v705, %v706
    %v708 = vrot.slane %v707, 4
    %v709 = vmax.f32 %v707, %v708
    %v710 = vrot.slane %v709, 2
    %v711 = vmax.f32 %v709, %v710
    %v712 = vrot.slane %v711, 1
    %v713 = vmax.f32 %v711, %v712
    %v714 = vsel %vm704, %v696, -inf
    %v715 = vsel %vm704, %v701, -inf
    %v716 = vmax.f32 %v714, %v715
    %v717 = vrot.slane %v716, 4
    %v718 = vmax.f32 %v716, %v717
    %v719 = vrot.slane %v718, 2
    %v720 = vmax.f32 %v718, %v719
    %v721 = vrot.slane %v720, 1
    %v722 = vmax.f32 %v720, %v721
    %v723 = vadd.f32 %v713, %v722
    %724 = vmatprep.subr.mxu0 0.0
    %725 = vmatpush1.msra.mxu0 %v617
    %726 = vmatprep.subr.mxu0 0.0
    %727 = vmatpush1.msra.mxu0 %v622
    %728 = vmatprep.subr.mxu0 0.0
    %729 = vmatpush1.msra.mxu0 %v696
    %730 = vmatprep.subr.mxu0 0.0
    %731 = vmatpush1.msra.mxu0 %v701
    %732 = vmatprep.subr.mxu0 0.0
    %733 = vmatpush1.msra.mxu0 0.0
    %734 = vmatprep.subr.mxu0 0.0
    %735 = vmatpush1.msra.mxu0 0.0
    %736 = vmatprep.subr.mxu0 0.0
    %737 = vmatpush1.msra.mxu0 0.0
    %738 = vmatprep.subr.mxu0 0.0
    %739 = vmatpush1.msra.mxu0 0.0
    %740 = vmatprep.subr.mxu0 0.0
    %741 = vmatpush1.msra.mxu0 0.0
    %742 = vmatprep.subr.mxu0 0.0
    %743 = vmatpush1.msra.mxu0 0.0
    %744 = vmatprep.subr.mxu0 0.0
    %745 = vmatpush1.msra.mxu0 0.0
    %746 = vmatprep.subr.mxu0 0.0
    %747 = vmatpush1.msra.mxu0 0.0
    %748 = vmatprep.subr.mxu0 0.0
    %749 = vmatpush1.msra.mxu0 0.0
    %750 = vmatprep.subr.mxu0 0.0
    %751 = vmatpush1.msra.mxu0 0.0
    %752 = vmatprep.subr.mxu0 0.0
    %753 = vmatpush1.msra.mxu0 0.0
    %754 = vmatprep.subr.mxu0 0.0
    %755 = vmatpush1.msra.mxu0 0.0
    %756 = vmatprep.subr.mxu0 0.0
    %757 = vmatpush1.msra.mxu0 0.0
    %758 = vmatprep.subr.mxu0 0.0
    %759 = vmatpush1.msra.mxu0 0.0
    %760 = vmatprep.subr.mxu0 0.0
    %761 = vmatpush1.msra.mxu0 0.0
    %762 = vmatprep.subr.mxu0 0.0
    %763 = vmatpush1.msra.mxu0 0.0
    %764 = vmatprep.subr.mxu0 0.0
    %765 = vmatpush1.msra.mxu0 0.0
    %766 = vmatprep.subr.mxu0 0.0
    %767 = vmatpush1.msra.mxu0 0.0
    %768 = vmatprep.subr.mxu0 0.0
    %769 = vmatpush1.msra.mxu0 0.0
    %770 = vmatprep.subr.mxu0 0.0
    %771 = vmatpush1.msra.mxu0 0.0
    %772 = vmatprep.subr.mxu0 0.0
    %773 = vmatpush1.msra.mxu0 0.0
    %774 = vmatprep.subr.mxu0 0.0
    %775 = vmatpush1.msra.mxu0 0.0
    %776 = vmatprep.subr.mxu0 0.0
    %777 = vmatpush1.msra.mxu0 0.0
    %778 = vmatprep.subr.mxu0 0.0
    %779 = vmatpush1.msra.mxu0 0.0
    %780 = vmatprep.subr.mxu0 0.0
    %781 = vmatpush1.msra.mxu0 0.0
    %782 = vmatprep.subr.mxu0 0.0
    %783 = vmatpush1.msra.mxu0 0.0
    %784 = vmatprep.subr.mxu0 0.0
    %785 = vmatpush1.msra.mxu0 0.0
    %786 = vmatprep.subr.mxu0 0.0
    %787 = vmatpush1.msra.mxu0 0.0
    %788 = vmatprep.mubr.f32.mxu0 0.0
    %789 = vmatmul.mubr.f32.gmra.mrb[0].mxu0 %v248
    %v790 = vpop.f32.mrb[0].mxu0
    %v791 = vadd.f32 0.0, %v790
    %v792 = vpop.f32.mrb[0].mxu0
    %793 = vmatprep.mubr.f32.mxu0 0.0
    %794 = vmatmul.mubr.f32.gmra.mrb[0].mxu0 %v251
    %v795 = vpop.f32.mrb[0].mxu0
    %v796 = vadd.f32 0.0, %v795
    %v797 = vpop.f32.mrb[0].mxu0
    %798 = vmatprep.mubr.f32.mxu0 0.0
    %799 = vmatmul.mubr.f32.gmra.mrb[0].mxu0 %v254
    %v800 = vpop.f32.mrb[0].mxu0
    %v801 = vadd.f32 0.0, %v800
    %v802 = vpop.f32.mrb[0].mxu0
    %803 = vmatprep.mubr.f32.mxu0 0.0
    %804 = vmatmul.mubr.f32.gmra.mrb[0].mxu0 %v257
    %v805 = vpop.f32.mrb[0].mxu0
    %v806 = vadd.f32 0.0, %v805
    %v807 = vpop.f32.mrb[0].mxu0
    %808 = vmatprep.mubr.f32.mxu0 0.0
    %809 = vmatmul.mubr.f32.gmra.mrb[0].mxu0 %v260
    %v810 = vpop.f32.mrb[0].mxu0
    %v811 = vadd.f32 0.0, %v810
    %v812 = vpop.f32.mrb[0].mxu0
    %813 = vmatprep.mubr.f32.mxu0 0.0
    %814 = vmatmul.mubr.f32.gmra.mrb[0].mxu0 %v263
    %v815 = vpop.f32.mrb[0].mxu0
    %v816 = vadd.f32 0.0, %v815
    %v817 = vpop.f32.mrb[0].mxu0
    %818 = vdwg.mxu0
    %v819 = vsub.f32 %v791, %v723
    %v820 = vsub.f32 %v796, %v723
    %v821 = vsub.f32 %v801, %v723
    %v822 = vsub.f32 %v806, %v723
    %v823 = vsub.f32 %v811, %v723
    %v824 = vsub.f32 %v816, %v723
    %v825 = vmul.f32 %v819, 1.442695
    %v826 = vpow.pop %v825
    %v827 = vmul.f32 %v820, 1.442695
    %v828 = vpow.pop %v827
    %v829 = vmul.f32 %v821, 1.442695
    %v830 = vpow.pop %v829
    %v831 = vmul.f32 %v822, 1.442695
    %v832 = vpow.pop %v831
    %v833 = vmul.f32 %v823, 1.442695
    %v834 = vpow.pop %v833
    %v835 = vmul.f32 %v824, 1.442695
    %v836 = vpow.pop %v835
    %vm837 = vcmp.lt.s32.totalorder %v379, 64
    %v838 = vld [vmem:[%s9] sm:$0x1]
    %v840 = vlaneseq
    %v841 = vshrl.u32 %v840, 7
    %v842 = vsub.s32 0, %v841
    %v843 = vrot.slane %v838, %v842
    %v845 = vadd.f32 %v791, %v843
    %v846 = vadd.f32 %v796, %v843
    %v847 = vadd.f32 %v801, %v843
    %v848 = vadd.f32 %v806, %v843
    %v849 = vadd.f32 %v811, %v843
    %v850 = vadd.f32 %v816, %v843
    %v851 = vmax.f32 %v845, 0.0
    %v852 = vmax.f32 %v846, 0.0
    %v853 = vmax.f32 %v847, 0.0
    %v854 = vmax.f32 %v848, 0.0
    %v855 = vmax.f32 %v849, 0.0
    %v856 = vmax.f32 %v850, 0.0
    %v857 = vsel %vm837, %v851, 1.0
    %v858 = vsel %vm837, %v852, 1.0
    %v859 = vsel %vm837, %v853, 1.0
    %v860 = vsel %vm837, %v854, 1.0
    %v861 = vsel %vm837, %v855, 1.0
    %v862 = vsel %vm837, %v856, 1.0
    %864 = vset.pattern.permute.xlu0 64
    %865 = vperm.xlu0 %864, %v826
    %v866 = vpop.permute.xlu0 %865
    %869 = vset.pattern.permute.xlu0 64
    %870 = vperm.xlu0 %869, %v828
    %v871 = vpop.permute.xlu0 %870
    %874 = vset.pattern.permute.xlu0 64
    %875 = vperm.xlu0 %874, %v830
    %v876 = vpop.permute.xlu0 %875
    %879 = vset.pattern.permute.xlu0 64
    %880 = vperm.xlu0 %879, %v832
    %v881 = vpop.permute.xlu0 %880
    %884 = vset.pattern.permute.xlu0 64
    %885 = vperm.xlu0 %884, %v834
    %v886 = vpop.permute.xlu0 %885
    %889 = vset.pattern.permute.xlu0 64
    %890 = vperm.xlu0 %889, %v836
    %v891 = vpop.permute.xlu0 %890
    %v893 = vmul.f32 %v857, %v866
    %v894 = vmul.f32 %v858, %v871
    %v895 = vmul.f32 %v859, %v876
    %v896 = vmul.f32 %v860, %v881
    %v897 = vmul.f32 %v861, %v886
    %v898 = vmul.f32 %v862, %v891
    %899 = vmatprep.subr.mxu0 0.0
    %900 = vmatpush1.msra.mxu0 %v893
    %901 = vmatprep.subr.mxu0 0.0
    %902 = vmatpush1.msra.mxu0 %v894
    %903 = vmatprep.subr.mxu0 0.0
    %904 = vmatpush1.msra.mxu0 %v895
    %905 = vmatprep.subr.mxu0 0.0
    %906 = vmatpush1.msra.mxu0 %v896
    %907 = vmatprep.subr.mxu0 0.0
    %908 = vmatpush1.msra.mxu0 %v897
    %909 = vmatprep.subr.mxu0 0.0
    %910 = vmatpush1.msra.mxu0 %v898
    %911 = vmatprep.subr.mxu0 0.0
    %912 = vmatpush1.msra.mxu0 0.0
    %913 = vmatprep.subr.mxu0 0.0
    %914 = vmatpush1.msra.mxu0 0.0
    %915 = vmatprep.subr.mxu0 0.0
    %916 = vmatpush1.msra.mxu0 0.0
    %917 = vmatprep.subr.mxu0 0.0
    %918 = vmatpush1.msra.mxu0 0.0
    %919 = vmatprep.subr.mxu0 0.0
    %920 = vmatpush1.msra.mxu0 0.0
    %921 = vmatprep.subr.mxu0 0.0
    %922 = vmatpush1.msra.mxu0 0.0
    %923 = vmatprep.subr.mxu0 0.0
    %924 = vmatpush1.msra.mxu0 0.0
    %925 = vmatprep.subr.mxu0 0.0
    %926 = vmatpush1.msra.mxu0 0.0
    %927 = vmatprep.subr.mxu0 0.0
    %928 = vmatpush1.msra.mxu0 0.0
    %929 = vmatprep.subr.mxu0 0.0
    %930 = vmatpush1.msra.mxu0 0.0
    %931 = vmatprep.subr.mxu0 0.0
    %932 = vmatpush1.msra.mxu0 0.0
    %933 = vmatprep.subr.mxu0 0.0
    %934 = vmatpush1.msra.mxu0 0.0
    %935 = vmatprep.subr.mxu0 0.0
    %936 = vmatpush1.msra.mxu0 0.0
    %937 = vmatprep.subr.mxu0 0.0
    %938 = vmatpush1.msra.mxu0 0.0
    %939 = vmatprep.subr.mxu0 0.0
    %940 = vmatpush1.msra.mxu0 0.0
    %941 = vmatprep.subr.mxu0 0.0
    %942 = vmatpush1.msra.mxu0 0.0
    %943 = vmatprep.subr.mxu0 0.0
    %944 = vmatpush1.msra.mxu0 0.0
    %945 = vmatprep.subr.mxu0 0.0
    %946 = vmatpush1.msra.mxu0 0.0
    %947 = vmatprep.subr.mxu0 0.0
    %948 = vmatpush1.msra.mxu0 0.0
    %949 = vmatprep.subr.mxu0 0.0
    %950 = vmatpush1.msra.mxu0 0.0
    %951 = vmatprep.subr.mxu0 0.0
    %952 = vmatpush1.msra.mxu0 0.0
    %953 = vmatprep.subr.mxu0 0.0
    %954 = vmatpush1.msra.mxu0 0.0
    %955 = vmatprep.subr.mxu0 0.0
    %956 = vmatpush1.msra.mxu0 0.0
    %957 = vmatprep.subr.mxu0 0.0
    %958 = vmatpush1.msra.mxu0 0.0
    %959 = vmatprep.subr.mxu0 0.0
    %960 = vmatpush1.msra.mxu0 0.0
    %961 = vmatprep.subr.mxu0 0.0
    %962 = vmatpush1.msra.mxu0 0.0
    %963 = vmatprep.mubr.f32.mxu0 0.0
    %964 = vmatmul.mubr.f32.gmra.mrb[0].mxu0 %v444
    %v965 = vpop.f32.mrb[0].mxu0
    %v966 = vadd.f32 0.0, %v965
    %v967 = vpop.f32.mrb[0].mxu0
    %968 = vmatprep.mubr.f32.mxu0 0.0
    %969 = vmatmul.mubr.f32.gmra.mrb[0].mxu0 %v447
    %v970 = vpop.f32.mrb[0].mxu0
    %v971 = vadd.f32 0.0, %v970
    %v972 = vpop.f32.mrb[0].mxu0
    %973 = vdwg.mxu0
    %v974 = vadd.f32 %v966, 1e-06
    %v975 = vadd.f32 %v971, 1e-06
    %v976 = vrcp.pop %v974
    %v977 = vrcp.pop %v975
    %979 = vset.pattern.permute.xlu0 64
    %980 = vperm.xlu0 %979, %v976
    %v981 = vpop.permute.xlu0 %980
    %984 = vset.pattern.permute.xlu0 64
    %985 = vperm.xlu0 %984, %v977
    %v986 = vpop.permute.xlu0 %985
    %v988 = vmul.f32 %v966, %v981
    %v989 = vmul.f32 %v971, %v986
    %v990 = vld [vmem:[%s10] sm:$0xff]
    %v991 = vld [vmem:[%s10 + $0x8] sm:$0xff]
    %v992 = vld [vmem:[%s10 + $0x10] sm:$0xff]
    %v993 = vld [vmem:[%s10 + $0x18] sm:$0xff]
    %v994 = vld [vmem:[%s10 + $0x20] sm:$0xff]
    %v995 = vld [vmem:[%s10 + $0x28] sm:$0xff]
    %v996 = vld [vmem:[%s10 + $0x30] sm:$0xff]
    %v997 = vld [vmem:[%s10 + $0x38] sm:$0xff]
    %vm998 = vcmask 523264
    %v1000 = vsel %vm998, %v988, 0
    %v1003 = vsel %vm998, %v989, 0
    %1005 = vmatprep.subr.mxu0 0.0
    %1006 = vmatpush1.msra.mxu0 %v990
    %1007 = vmatprep.subr.mxu0 0.0
    %1008 = vmatpush1.msra.mxu0 %v991
    %1009 = vmatprep.subr.mxu0 0.0
    %1010 = vmatpush1.msra.mxu0 %v992
    %1011 = vmatprep.subr.mxu0 0.0
    %1012 = vmatpush1.msra.mxu0 %v993
    %1013 = vmatprep.subr.mxu0 0.0
    %1014 = vmatpush1.msra.mxu0 %v994
    %1015 = vmatprep.subr.mxu0 0.0
    %1016 = vmatpush1.msra.mxu0 %v995
    %1017 = vmatprep.subr.mxu0 0.0
    %1018 = vmatpush1.msra.mxu0 %v996
    %1019 = vmatprep.subr.mxu0 0.0
    %1020 = vmatpush1.msra.mxu0 %v997
    %1021 = vmatprep.subr.mxu0 0.0
    %1022 = vmatpush1.msra.mxu0 0.0
    %1023 = vmatprep.subr.mxu0 0.0
    %1024 = vmatpush1.msra.mxu0 0.0
    %1025 = vmatprep.subr.mxu0 0.0
    %1026 = vmatpush1.msra.mxu0 0.0
    %1027 = vmatprep.subr.mxu0 0.0
    %1028 = vmatpush1.msra.mxu0 0.0
    %1029 = vmatprep.subr.mxu0 0.0
    %1030 = vmatpush1.msra.mxu0 0.0
    %1031 = vmatprep.subr.mxu0 0.0
    %1032 = vmatpush1.msra.mxu0 0.0
    %1033 = vmatprep.subr.mxu0 0.0
    %1034 = vmatpush1.msra.mxu0 0.0
    %1035 = vmatprep.subr.mxu0 0.0
    %1036 = vmatpush1.msra.mxu0 0.0
    %1037 = vmatprep.subr.mxu0 0.0
    %1038 = vmatpush1.msra.mxu0 0.0
    %1039 = vmatprep.subr.mxu0 0.0
    %1040 = vmatpush1.msra.mxu0 0.0
    %1041 = vmatprep.subr.mxu0 0.0
    %1042 = vmatpush1.msra.mxu0 0.0
    %1043 = vmatprep.subr.mxu0 0.0
    %1044 = vmatpush1.msra.mxu0 0.0
    %1045 = vmatprep.subr.mxu0 0.0
    %1046 = vmatpush1.msra.mxu0 0.0
    %1047 = vmatprep.subr.mxu0 0.0
    %1048 = vmatpush1.msra.mxu0 0.0
    %1049 = vmatprep.subr.mxu0 0.0
    %1050 = vmatpush1.msra.mxu0 0.0
    %1051 = vmatprep.subr.mxu0 0.0
    %1052 = vmatpush1.msra.mxu0 0.0
    %1053 = vmatprep.subr.mxu0 0.0
    %1054 = vmatpush1.msra.mxu0 0.0
    %1055 = vmatprep.subr.mxu0 0.0
    %1056 = vmatpush1.msra.mxu0 0.0
    %1057 = vmatprep.subr.mxu0 0.0
    %1058 = vmatpush1.msra.mxu0 0.0
    %1059 = vmatprep.subr.mxu0 0.0
    %1060 = vmatpush1.msra.mxu0 0.0
    %1061 = vmatprep.subr.mxu0 0.0
    %1062 = vmatpush1.msra.mxu0 0.0
    %1063 = vmatprep.subr.mxu0 0.0
    %1064 = vmatpush1.msra.mxu0 0.0
    %1065 = vmatprep.subr.mxu0 0.0
    %1066 = vmatpush1.msra.mxu0 0.0
    %1067 = vmatprep.subr.mxu0 0.0
    %1068 = vmatpush1.msra.mxu0 0.0
    %1069 = vmatprep.mubr.f32.mxu0 0.0
    %1070 = vmatmul.mubr.f32.gmra.mrb[0].mxu0 %v1000
    %v1071 = vpop.f32.mrb[0].mxu0
    %v1072 = vadd.f32 0.0, %v1071
    %v1073 = vpop.f32.mrb[0].mxu0
    %1074 = vmatprep.mubr.f32.mxu0 0.0
    %1075 = vmatmul.mubr.f32.gmra.mrb[0].mxu0 %v1003
    %v1076 = vpop.f32.mrb[0].mxu0
    %v1077 = vadd.f32 0.0, %v1076
    %v1078 = vpop.f32.mrb[0].mxu0
    %1079 = vdwg.mxu0
    %v1080 = vld [vmem:[%s11] sm:$0xff]
    %v1081 = vld [vmem:[%s11 + $0x8] sm:$0xff]
    %v1082 = vld [vmem:[%s11 + $0x10] sm:$0xff]
    %v1083 = vld [vmem:[%s11 + $0x18] sm:$0xff]
    %v1084 = vld [vmem:[%s11 + $0x20] sm:$0xff]
    %v1085 = vld [vmem:[%s11 + $0x28] sm:$0xff]
    %v1086 = vld [vmem:[%s11 + $0x30] sm:$0xff]
    %v1087 = vld [vmem:[%s11 + $0x38] sm:$0xff]
    %1088 = vmatprep.subr.mxu0 0.0
    %1089 = vmatpush1.msra.mxu0 %v1080
    %1090 = vmatprep.subr.mxu0 0.0
    %1091 = vmatpush1.msra.mxu0 %v1081
    %1092 = vmatprep.subr.mxu0 0.0
    %1093 = vmatpush1.msra.mxu0 %v1082
    %1094 = vmatprep.subr.mxu0 0.0
    %1095 = vmatpush1.msra.mxu0 %v1083
    %1096 = vmatprep.subr.mxu0 0.0
    %1097 = vmatpush1.msra.mxu0 %v1084
    %1098 = vmatprep.subr.mxu0 0.0
    %1099 = vmatpush1.msra.mxu0 %v1085
    %1100 = vmatprep.subr.mxu0 0.0
    %1101 = vmatpush1.msra.mxu0 %v1086
    %1102 = vmatprep.subr.mxu0 0.0
    %1103 = vmatpush1.msra.mxu0 %v1087
    %1104 = vmatprep.subr.mxu0 0.0
    %1105 = vmatpush1.msra.mxu0 0.0
    %1106 = vmatprep.subr.mxu0 0.0
    %1107 = vmatpush1.msra.mxu0 0.0
    %1108 = vmatprep.subr.mxu0 0.0
    %1109 = vmatpush1.msra.mxu0 0.0
    %1110 = vmatprep.subr.mxu0 0.0
    %1111 = vmatpush1.msra.mxu0 0.0
    %1112 = vmatprep.subr.mxu0 0.0
    %1113 = vmatpush1.msra.mxu0 0.0
    %1114 = vmatprep.subr.mxu0 0.0
    %1115 = vmatpush1.msra.mxu0 0.0
    %1116 = vmatprep.subr.mxu0 0.0
    %1117 = vmatpush1.msra.mxu0 0.0
    %1118 = vmatprep.subr.mxu0 0.0
    %1119 = vmatpush1.msra.mxu0 0.0
    %1120 = vmatprep.subr.mxu0 0.0
    %1121 = vmatpush1.msra.mxu0 0.0
    %1122 = vmatprep.subr.mxu0 0.0
    %1123 = vmatpush1.msra.mxu0 0.0
    %1124 = vmatprep.subr.mxu0 0.0
    %1125 = vmatpush1.msra.mxu0 0.0
    %1126 = vmatprep.subr.mxu0 0.0
    %1127 = vmatpush1.msra.mxu0 0.0
    %1128 = vmatprep.subr.mxu0 0.0
    %1129 = vmatpush1.msra.mxu0 0.0
    %1130 = vmatprep.subr.mxu0 0.0
    %1131 = vmatpush1.msra.mxu0 0.0
    %1132 = vmatprep.subr.mxu0 0.0
    %1133 = vmatpush1.msra.mxu0 0.0
    %1134 = vmatprep.subr.mxu0 0.0
    %1135 = vmatpush1.msra.mxu0 0.0
    %1136 = vmatprep.subr.mxu0 0.0
    %1137 = vmatpush1.msra.mxu0 0.0
    %1138 = vmatprep.subr.mxu0 0.0
    %1139 = vmatpush1.msra.mxu0 0.0
    %1140 = vmatprep.subr.mxu0 0.0
    %1141 = vmatpush1.msra.mxu0 0.0
    %1142 = vmatprep.subr.mxu0 0.0
    %1143 = vmatpush1.msra.mxu0 0.0
    %1144 = vmatprep.subr.mxu0 0.0
    %1145 = vmatpush1.msra.mxu0 0.0
    %1146 = vmatprep.subr.mxu0 0.0
    %1147 = vmatpush1.msra.mxu0 0.0
    %1148 = vmatprep.subr.mxu0 0.0
    %1149 = vmatpush1.msra.mxu0 0.0
    %1150 = vmatprep.subr.mxu0 0.0
    %1151 = vmatpush1.msra.mxu0 0.0
    %1152 = vmatprep.mubr.f32.mxu0 0.0
    %1153 = vmatmul.mubr.f32.gmra.mrb[0].mxu0 %v1000
    %v1154 = vpop.f32.mrb[0].mxu0
    %v1155 = vadd.f32 0.0, %v1154
    %v1156 = vpop.f32.mrb[0].mxu0
    %1157 = vmatprep.mubr.f32.mxu0 0.0
    %1158 = vmatmul.mubr.f32.gmra.mrb[0].mxu0 %v1003
    %v1159 = vpop.f32.mrb[0].mxu0
    %v1160 = vadd.f32 0.0, %v1159
    %v1161 = vpop.f32.mrb[0].mxu0
    %1162 = vdwg.mxu0
    %v1163 = vsel %vm704, %v1072, -inf
    %v1164 = vsel %vm704, %v1077, -inf
    %v1165 = vmax.f32 %v1163, %v1164
    %v1166 = vrot.slane %v1165, 4
    %v1167 = vmax.f32 %v1165, %v1166
    %v1168 = vrot.slane %v1167, 2
    %v1169 = vmax.f32 %v1167, %v1168
    %v1170 = vrot.slane %v1169, 1
    %v1171 = vmax.f32 %v1169, %v1170
    %v1172 = vsel %vm704, %v1155, -inf
    %v1173 = vsel %vm704, %v1160, -inf
    %v1174 = vmax.f32 %v1172, %v1173
    %v1175 = vrot.slane %v1174, 4
    %v1176 = vmax.f32 %v1174, %v1175
    %v1177 = vrot.slane %v1176, 2
    %v1178 = vmax.f32 %v1176, %v1177
    %v1179 = vrot.slane %v1178, 1
    %v1180 = vmax.f32 %v1178, %v1179
    %v1181 = vadd.f32 %v1171, %v1180
    %1182 = vmatprep.subr.mxu0 0.0
    %1183 = vmatpush1.msra.mxu0 %v1072
    %1184 = vmatprep.subr.mxu0 0.0
    %1185 = vmatpush1.msra.mxu0 %v1077
    %1186 = vmatprep.subr.mxu0 0.0
    %1187 = vmatpush1.msra.mxu0 %v1155
    %1188 = vmatprep.subr.mxu0 0.0
    %1189 = vmatpush1.msra.mxu0 %v1160
    %1190 = vmatprep.subr.mxu0 0.0
    %1191 = vmatpush1.msra.mxu0 0.0
    %1192 = vmatprep.subr.mxu0 0.0
    %1193 = vmatpush1.msra.mxu0 0.0
    %1194 = vmatprep.subr.mxu0 0.0
    %1195 = vmatpush1.msra.mxu0 0.0
    %1196 = vmatprep.subr.mxu0 0.0
    %1197 = vmatpush1.msra.mxu0 0.0
    %1198 = vmatprep.subr.mxu0 0.0
    %1199 = vmatpush1.msra.mxu0 0.0
    %1200 = vmatprep.subr.mxu0 0.0
    %1201 = vmatpush1.msra.mxu0 0.0
    %1202 = vmatprep.subr.mxu0 0.0
    %1203 = vmatpush1.msra.mxu0 0.0
    %1204 = vmatprep.subr.mxu0 0.0
    %1205 = vmatpush1.msra.mxu0 0.0
    %1206 = vmatprep.subr.mxu0 0.0
    %1207 = vmatpush1.msra.mxu0 0.0
    %1208 = vmatprep.subr.mxu0 0.0
    %1209 = vmatpush1.msra.mxu0 0.0
    %1210 = vmatprep.subr.mxu0 0.0
    %1211 = vmatpush1.msra.mxu0 0.0
    %1212 = vmatprep.subr.mxu0 0.0
    %1213 = vmatpush1.msra.mxu0 0.0
    %1214 = vmatprep.subr.mxu0 0.0
    %1215 = vmatpush1.msra.mxu0 0.0
    %1216 = vmatprep.subr.mxu0 0.0
    %1217 = vmatpush1.msra.mxu0 0.0
    %1218 = vmatprep.subr.mxu0 0.0
    %1219 = vmatpush1.msra.mxu0 0.0
    %1220 = vmatprep.subr.mxu0 0.0
    %1221 = vmatpush1.msra.mxu0 0.0
    %1222 = vmatprep.subr.mxu0 0.0
    %1223 = vmatpush1.msra.mxu0 0.0
    %1224 = vmatprep.subr.mxu0 0.0
    %1225 = vmatpush1.msra.mxu0 0.0
    %1226 = vmatprep.subr.mxu0 0.0
    %1227 = vmatpush1.msra.mxu0 0.0
    %1228 = vmatprep.subr.mxu0 0.0
    %1229 = vmatpush1.msra.mxu0 0.0
    %1230 = vmatprep.subr.mxu0 0.0
    %1231 = vmatpush1.msra.mxu0 0.0
    %1232 = vmatprep.subr.mxu0 0.0
    %1233 = vmatpush1.msra.mxu0 0.0
    %1234 = vmatprep.subr.mxu0 0.0
    %1235 = vmatpush1.msra.mxu0 0.0
    %1236 = vmatprep.subr.mxu0 0.0
    %1237 = vmatpush1.msra.mxu0 0.0
    %1238 = vmatprep.subr.mxu0 0.0
    %1239 = vmatpush1.msra.mxu0 0.0
    %1240 = vmatprep.subr.mxu0 0.0
    %1241 = vmatpush1.msra.mxu0 0.0
    %1242 = vmatprep.subr.mxu0 0.0
    %1243 = vmatpush1.msra.mxu0 0.0
    %1244 = vmatprep.subr.mxu0 0.0
    %1245 = vmatpush1.msra.mxu0 0.0
    %1246 = vmatprep.mubr.f32.mxu0 0.0
    %1247 = vmatmul.mubr.f32.gmra.mrb[0].mxu0 %v248
    %v1248 = vpop.f32.mrb[0].mxu0
    %v1249 = vadd.f32 0.0, %v1248
    %v1250 = vpop.f32.mrb[0].mxu0
    %1251 = vmatprep.mubr.f32.mxu0 0.0
    %1252 = vmatmul.mubr.f32.gmra.mrb[0].mxu0 %v251
    %v1253 = vpop.f32.mrb[0].mxu0
    %v1254 = vadd.f32 0.0, %v1253
    %v1255 = vpop.f32.mrb[0].mxu0
    %1256 = vmatprep.mubr.f32.mxu0 0.0
    %1257 = vmatmul.mubr.f32.gmra.mrb[0].mxu0 %v254
    %v1258 = vpop.f32.mrb[0].mxu0
    %v1259 = vadd.f32 0.0, %v1258
    %v1260 = vpop.f32.mrb[0].mxu0
    %1261 = vmatprep.mubr.f32.mxu0 0.0
    %1262 = vmatmul.mubr.f32.gmra.mrb[0].mxu0 %v257
    %v1263 = vpop.f32.mrb[0].mxu0
    %v1264 = vadd.f32 0.0, %v1263
    %v1265 = vpop.f32.mrb[0].mxu0
    %1266 = vmatprep.mubr.f32.mxu0 0.0
    %1267 = vmatmul.mubr.f32.gmra.mrb[0].mxu0 %v260
    %v1268 = vpop.f32.mrb[0].mxu0
    %v1269 = vadd.f32 0.0, %v1268
    %v1270 = vpop.f32.mrb[0].mxu0
    %1271 = vmatprep.mubr.f32.mxu0 0.0
    %1272 = vmatmul.mubr.f32.gmra.mrb[0].mxu0 %v263
    %v1273 = vpop.f32.mrb[0].mxu0
    %v1274 = vadd.f32 0.0, %v1273
    %v1275 = vpop.f32.mrb[0].mxu0
    %1276 = vdwg.mxu0
    %v1277 = vsub.f32 %v1249, %v1181
    %v1278 = vsub.f32 %v1254, %v1181
    %v1279 = vsub.f32 %v1259, %v1181
    %v1280 = vsub.f32 %v1264, %v1181
    %v1281 = vsub.f32 %v1269, %v1181
    %v1282 = vsub.f32 %v1274, %v1181
    %v1283 = vmul.f32 %v1277, 1.442695
    %v1284 = vpow.pop %v1283
    %v1285 = vmul.f32 %v1278, 1.442695
    %v1286 = vpow.pop %v1285
    %v1287 = vmul.f32 %v1279, 1.442695
    %v1288 = vpow.pop %v1287
    %v1289 = vmul.f32 %v1280, 1.442695
    %v1290 = vpow.pop %v1289
    %v1291 = vmul.f32 %v1281, 1.442695
    %v1292 = vpow.pop %v1291
    %v1293 = vmul.f32 %v1282, 1.442695
    %v1294 = vpow.pop %v1293
    %v1295 = vld [vmem:[%s12] sm:$0x1]
    %v1297 = vlaneseq
    %v1298 = vshrl.u32 %v1297, 7
    %v1299 = vsub.s32 0, %v1298
    %v1300 = vrot.slane %v1295, %v1299
    %v1302 = vadd.f32 %v1249, %v1300
    %v1303 = vadd.f32 %v1254, %v1300
    %v1304 = vadd.f32 %v1259, %v1300
    %v1305 = vadd.f32 %v1264, %v1300
    %v1306 = vadd.f32 %v1269, %v1300
    %v1307 = vadd.f32 %v1274, %v1300
    %v1308 = vmax.f32 %v1302, 0.0
    %v1309 = vmax.f32 %v1303, 0.0
    %v1310 = vmax.f32 %v1304, 0.0
    %v1311 = vmax.f32 %v1305, 0.0
    %v1312 = vmax.f32 %v1306, 0.0
    %v1313 = vmax.f32 %v1307, 0.0
    %v1314 = vsel %vm837, %v1308, 1.0
    %v1315 = vsel %vm837, %v1309, 1.0
    %v1316 = vsel %vm837, %v1310, 1.0
    %v1317 = vsel %vm837, %v1311, 1.0
    %v1318 = vsel %vm837, %v1312, 1.0
    %v1319 = vsel %vm837, %v1313, 1.0
    %1321 = vset.pattern.permute.xlu0 64
    %1322 = vperm.xlu0 %1321, %v1284
    %v1323 = vpop.permute.xlu0 %1322
    %1326 = vset.pattern.permute.xlu0 64
    %1327 = vperm.xlu0 %1326, %v1286
    %v1328 = vpop.permute.xlu0 %1327
    %1331 = vset.pattern.permute.xlu0 64
    %1332 = vperm.xlu0 %1331, %v1288
    %v1333 = vpop.permute.xlu0 %1332
    %1336 = vset.pattern.permute.xlu0 64
    %1337 = vperm.xlu0 %1336, %v1290
    %v1338 = vpop.permute.xlu0 %1337
    %1341 = vset.pattern.permute.xlu0 64
    %1342 = vperm.xlu0 %1341, %v1292
    %v1343 = vpop.permute.xlu0 %1342
    %1346 = vset.pattern.permute.xlu0 64
    %1347 = vperm.xlu0 %1346, %v1294
    %v1348 = vpop.permute.xlu0 %1347
    %v1350 = vmul.f32 %v1314, %v1323
    %v1351 = vmul.f32 %v1315, %v1328
    %v1352 = vmul.f32 %v1316, %v1333
    %v1353 = vmul.f32 %v1317, %v1338
    %v1354 = vmul.f32 %v1318, %v1343
    %v1355 = vmul.f32 %v1319, %v1348
    %1356 = vmatprep.subr.mxu0 0.0
    %1357 = vmatpush1.msra.mxu0 %v1350
    %1358 = vmatprep.subr.mxu0 0.0
    %1359 = vmatpush1.msra.mxu0 %v1351
    %1360 = vmatprep.subr.mxu0 0.0
    %1361 = vmatpush1.msra.mxu0 %v1352
    %1362 = vmatprep.subr.mxu0 0.0
    %1363 = vmatpush1.msra.mxu0 %v1353
    %1364 = vmatprep.subr.mxu0 0.0
    %1365 = vmatpush1.msra.mxu0 %v1354
    %1366 = vmatprep.subr.mxu0 0.0
    %1367 = vmatpush1.msra.mxu0 %v1355
    %1368 = vmatprep.subr.mxu0 0.0
    %1369 = vmatpush1.msra.mxu0 0.0
    %1370 = vmatprep.subr.mxu0 0.0
    %1371 = vmatpush1.msra.mxu0 0.0
    %1372 = vmatprep.subr.mxu0 0.0
    %1373 = vmatpush1.msra.mxu0 0.0
    %1374 = vmatprep.subr.mxu0 0.0
    %1375 = vmatpush1.msra.mxu0 0.0
    %1376 = vmatprep.subr.mxu0 0.0
    %1377 = vmatpush1.msra.mxu0 0.0
    %1378 = vmatprep.subr.mxu0 0.0
    %1379 = vmatpush1.msra.mxu0 0.0
    %1380 = vmatprep.subr.mxu0 0.0
    %1381 = vmatpush1.msra.mxu0 0.0
    %1382 = vmatprep.subr.mxu0 0.0
    %1383 = vmatpush1.msra.mxu0 0.0
    %1384 = vmatprep.subr.mxu0 0.0
    %1385 = vmatpush1.msra.mxu0 0.0
    %1386 = vmatprep.subr.mxu0 0.0
    %1387 = vmatpush1.msra.mxu0 0.0
    %1388 = vmatprep.subr.mxu0 0.0
    %1389 = vmatpush1.msra.mxu0 0.0
    %1390 = vmatprep.subr.mxu0 0.0
    %1391 = vmatpush1.msra.mxu0 0.0
    %1392 = vmatprep.subr.mxu0 0.0
    %1393 = vmatpush1.msra.mxu0 0.0
    %1394 = vmatprep.subr.mxu0 0.0
    %1395 = vmatpush1.msra.mxu0 0.0
    %1396 = vmatprep.subr.mxu0 0.0
    %1397 = vmatpush1.msra.mxu0 0.0
    %1398 = vmatprep.subr.mxu0 0.0
    %1399 = vmatpush1.msra.mxu0 0.0
    %1400 = vmatprep.subr.mxu0 0.0
    %1401 = vmatpush1.msra.mxu0 0.0
    %1402 = vmatprep.subr.mxu0 0.0
    %1403 = vmatpush1.msra.mxu0 0.0
    %1404 = vmatprep.subr.mxu0 0.0
    %1405 = vmatpush1.msra.mxu0 0.0
    %1406 = vmatprep.subr.mxu0 0.0
    %1407 = vmatpush1.msra.mxu0 0.0
    %1408 = vmatprep.subr.mxu0 0.0
    %1409 = vmatpush1.msra.mxu0 0.0
    %1410 = vmatprep.subr.mxu0 0.0
    %1411 = vmatpush1.msra.mxu0 0.0
    %1412 = vmatprep.subr.mxu0 0.0
    %1413 = vmatpush1.msra.mxu0 0.0
    %1414 = vmatprep.subr.mxu0 0.0
    %1415 = vmatpush1.msra.mxu0 0.0
    %1416 = vmatprep.subr.mxu0 0.0
    %1417 = vmatpush1.msra.mxu0 0.0
    %1418 = vmatprep.subr.mxu0 0.0
    %1419 = vmatpush1.msra.mxu0 0.0
    %1420 = vmatprep.mubr.f32.mxu0 0.0
    %1421 = vmatmul.mubr.f32.gmra.mrb[0].mxu0 %v444
    %v1422 = vpop.f32.mrb[0].mxu0
    %v1423 = vadd.f32 0.0, %v1422
    %v1424 = vpop.f32.mrb[0].mxu0
    %1425 = vmatprep.mubr.f32.mxu0 0.0
    %1426 = vmatmul.mubr.f32.gmra.mrb[0].mxu0 %v447
    %v1427 = vpop.f32.mrb[0].mxu0
    %v1428 = vadd.f32 0.0, %v1427
    %v1429 = vpop.f32.mrb[0].mxu0
    %1430 = vdwg.mxu0
    %v1431 = vadd.f32 %v1423, 1e-06
    %v1432 = vadd.f32 %v1428, 1e-06
    %v1433 = vrcp.pop %v1431
    %v1434 = vrcp.pop %v1432
    %1436 = vset.pattern.permute.xlu0 64
    %1437 = vperm.xlu0 %1436, %v1433
    %v1438 = vpop.permute.xlu0 %1437
    %1441 = vset.pattern.permute.xlu0 64
    %1442 = vperm.xlu0 %1441, %v1434
    %v1443 = vpop.permute.xlu0 %1442
    %v1445 = vmul.f32 %v1423, %v1438
    %v1446 = vmul.f32 %v1428, %v1443
    %v1447 = vld [vmem:[%s3] sm:$0x3]
    %vm1448 = vcmask 130048
    %v1450 = vsel %vm1448, %v1447, 0
    %1452 = vmatprep.subr.mxu0 0.0
    %1453 = vmatpush1.msra.mxu0 %v1445
    %1454 = vmatprep.subr.mxu0 0.0
    %1455 = vmatpush1.msra.mxu0 %v1446
    %1456 = vmatprep.subr.mxu0 0.0
    %1457 = vmatpush1.msra.mxu0 0.0
    %1458 = vmatprep.subr.mxu0 0.0
    %1459 = vmatpush1.msra.mxu0 0.0
    %1460 = vmatprep.subr.mxu0 0.0
    %1461 = vmatpush1.msra.mxu0 0.0
    %1462 = vmatprep.subr.mxu0 0.0
    %1463 = vmatpush1.msra.mxu0 0.0
    %1464 = vmatprep.subr.mxu0 0.0
    %1465 = vmatpush1.msra.mxu0 0.0
    %1466 = vmatprep.subr.mxu0 0.0
    %1467 = vmatpush1.msra.mxu0 0.0
    %1468 = vmatprep.subr.mxu0 0.0
    %1469 = vmatpush1.msra.mxu0 0.0
    %1470 = vmatprep.subr.mxu0 0.0
    %1471 = vmatpush1.msra.mxu0 0.0
    %1472 = vmatprep.subr.mxu0 0.0
    %1473 = vmatpush1.msra.mxu0 0.0
    %1474 = vmatprep.subr.mxu0 0.0
    %1475 = vmatpush1.msra.mxu0 0.0
    %1476 = vmatprep.subr.mxu0 0.0
    %1477 = vmatpush1.msra.mxu0 0.0
    %1478 = vmatprep.subr.mxu0 0.0
    %1479 = vmatpush1.msra.mxu0 0.0
    %1480 = vmatprep.subr.mxu0 0.0
    %1481 = vmatpush1.msra.mxu0 0.0
    %1482 = vmatprep.subr.mxu0 0.0
    %1483 = vmatpush1.msra.mxu0 0.0
    %1484 = vmatprep.subr.mxu0 0.0
    %1485 = vmatpush1.msra.mxu0 0.0
    %1486 = vmatprep.subr.mxu0 0.0
    %1487 = vmatpush1.msra.mxu0 0.0
    %1488 = vmatprep.subr.mxu0 0.0
    %1489 = vmatpush1.msra.mxu0 0.0
    %1490 = vmatprep.subr.mxu0 0.0
    %1491 = vmatpush1.msra.mxu0 0.0
    %1492 = vmatprep.subr.mxu0 0.0
    %1493 = vmatpush1.msra.mxu0 0.0
    %1494 = vmatprep.subr.mxu0 0.0
    %1495 = vmatpush1.msra.mxu0 0.0
    %1496 = vmatprep.subr.mxu0 0.0
    %1497 = vmatpush1.msra.mxu0 0.0
    %1498 = vmatprep.subr.mxu0 0.0
    %1499 = vmatpush1.msra.mxu0 0.0
    %1500 = vmatprep.subr.mxu0 0.0
    %1501 = vmatpush1.msra.mxu0 0.0
    %1502 = vmatprep.subr.mxu0 0.0
    %1503 = vmatpush1.msra.mxu0 0.0
    %1504 = vmatprep.subr.mxu0 0.0
    %1505 = vmatpush1.msra.mxu0 0.0
    %1506 = vmatprep.subr.mxu0 0.0
    %1507 = vmatpush1.msra.mxu0 0.0
    %1508 = vmatprep.subr.mxu0 0.0
    %1509 = vmatpush1.msra.mxu0 0.0
    %1510 = vmatprep.subr.mxu0 0.0
    %1511 = vmatpush1.msra.mxu0 0.0
    %1512 = vmatprep.subr.mxu0 0.0
    %1513 = vmatpush1.msra.mxu0 0.0
    %1514 = vmatprep.subr.mxu0 0.0
    %1515 = vmatpush1.msra.mxu0 0.0
    %1516 = vmatprep.mubr.f32.mxu0 0.0
    %1517 = vmatmul.mubr.f32.gmra.mrb[0].mxu0 %v1450
    %v1518 = vpop.f32.mrb[0].mxu0
    %v1519 = vadd.f32 0.0, %v1518
    %v1520 = vpop.f32.mrb[0].mxu0
    %1521 = vdwg.mxu0
    %v1522 = vld [vmem:[%s13] sm:$0xff]
    %v1523 = vld [vmem:[%s13 + $0x8] sm:$0xff]
    %v1524 = vld [vmem:[%s13 + $0x10] sm:$0xff]
    %v1525 = vld [vmem:[%s13 + $0x18] sm:$0xff]
    %v1526 = vld [vmem:[%s13 + $0x20] sm:$0xff]
    %v1527 = vld [vmem:[%s13 + $0x28] sm:$0xff]
    %v1528 = vld [vmem:[%s13 + $0x30] sm:$0xff]
    %v1529 = vld [vmem:[%s13 + $0x38] sm:$0xff]
    %v1530 = vld [vmem:[%s14] sm:$0x1]
    %v1532 = vlaneseq
    %v1533 = vshrl.u32 %v1532, 7
    %v1534 = vsub.s32 0, %v1533
    %v1535 = vrot.slane %v1530, %v1534
    %v1538 = vsel %vm998, %v1519, 0
    %1540 = vmatprep.subr.mxu0 0.0
    %1541 = vmatpush1.msra.mxu0 %v1522
    %1542 = vmatprep.subr.mxu0 0.0
    %1543 = vmatpush1.msra.mxu0 %v1523
    %1544 = vmatprep.subr.mxu0 0.0
    %1545 = vmatpush1.msra.mxu0 %v1524
    %1546 = vmatprep.subr.mxu0 0.0
    %1547 = vmatpush1.msra.mxu0 %v1525
    %1548 = vmatprep.subr.mxu0 0.0
    %1549 = vmatpush1.msra.mxu0 %v1526
    %1550 = vmatprep.subr.mxu0 0.0
    %1551 = vmatpush1.msra.mxu0 %v1527
    %1552 = vmatprep.subr.mxu0 0.0
    %1553 = vmatpush1.msra.mxu0 %v1528
    %1554 = vmatprep.subr.mxu0 0.0
    %1555 = vmatpush1.msra.mxu0 %v1529
    %1556 = vmatprep.subr.mxu0 0.0
    %1557 = vmatpush1.msra.mxu0 0.0
    %1558 = vmatprep.subr.mxu0 0.0
    %1559 = vmatpush1.msra.mxu0 0.0
    %1560 = vmatprep.subr.mxu0 0.0
    %1561 = vmatpush1.msra.mxu0 0.0
    %1562 = vmatprep.subr.mxu0 0.0
    %1563 = vmatpush1.msra.mxu0 0.0
    %1564 = vmatprep.subr.mxu0 0.0
    %1565 = vmatpush1.msra.mxu0 0.0
    %1566 = vmatprep.subr.mxu0 0.0
    %1567 = vmatpush1.msra.mxu0 0.0
    %1568 = vmatprep.subr.mxu0 0.0
    %1569 = vmatpush1.msra.mxu0 0.0
    %1570 = vmatprep.subr.mxu0 0.0
    %1571 = vmatpush1.msra.mxu0 0.0
    %1572 = vmatprep.subr.mxu0 0.0
    %1573 = vmatpush1.msra.mxu0 0.0
    %1574 = vmatprep.subr.mxu0 0.0
    %1575 = vmatpush1.msra.mxu0 0.0
    %1576 = vmatprep.subr.mxu0 0.0
    %1577 = vmatpush1.msra.mxu0 0.0
    %1578 = vmatprep.subr.mxu0 0.0
    %1579 = vmatpush1.msra.mxu0 0.0
    %1580 = vmatprep.subr.mxu0 0.0
    %1581 = vmatpush1.msra.mxu0 0.0
    %1582 = vmatprep.subr.mxu0 0.0
    %1583 = vmatpush1.msra.mxu0 0.0
    %1584 = vmatprep.subr.mxu0 0.0
    %1585 = vmatpush1.msra.mxu0 0.0
    %1586 = vmatprep.subr.mxu0 0.0
    %1587 = vmatpush1.msra.mxu0 0.0
    %1588 = vmatprep.subr.mxu0 0.0
    %1589 = vmatpush1.msra.mxu0 0.0
    %1590 = vmatprep.subr.mxu0 0.0
    %1591 = vmatpush1.msra.mxu0 0.0
    %1592 = vmatprep.subr.mxu0 0.0
    %1593 = vmatpush1.msra.mxu0 0.0
    %1594 = vmatprep.subr.mxu0 0.0
    %1595 = vmatpush1.msra.mxu0 0.0
    %1596 = vmatprep.subr.mxu0 0.0
    %1597 = vmatpush1.msra.mxu0 0.0
    %1598 = vmatprep.subr.mxu0 0.0
    %1599 = vmatpush1.msra.mxu0 0.0
    %1600 = vmatprep.subr.mxu0 0.0
    %1601 = vmatpush1.msra.mxu0 0.0
    %1602 = vmatprep.subr.mxu0 0.0
    %1603 = vmatpush1.msra.mxu0 0.0
    %1604 = vmatprep.mubr.f32.mxu0 0.0
    %1605 = vmatmul.mubr.f32.gmra.mrb[0].mxu0 %v1538
    %v1606 = vpop.f32.mrb[0].mxu0
    %v1607 = vadd.f32 %v1535, %v1606
    %v1608 = vpop.f32.mrb[0].mxu0
    %1609 = vdwg.mxu0
    %v1610 = vmax.f32 %v1607, 0.0
    %v1611 = vld [vmem:[%s15] sm:$0xff]
    %v1612 = vld [vmem:[%s15 + $0x8] sm:$0xff]
    %v1613 = vld [vmem:[%s15 + $0x10] sm:$0xff]
    %v1614 = vld [vmem:[%s15 + $0x18] sm:$0xff]
    %v1615 = vld [vmem:[%s16] sm:$0x1]
    %v1617 = vlaneseq
    %v1618 = vshrl.u32 %v1617, 7
    %v1619 = vsub.s32 0, %v1618
    %v1620 = vrot.slane %v1615, %v1619
    %v1623 = vsel %vm246, %v1610, 0
    %1625 = vmatprep.subr.mxu0 0.0
    %1626 = vmatpush1.msra.mxu0 %v1611
    %1627 = vmatprep.subr.mxu0 0.0
    %1628 = vmatpush1.msra.mxu0 %v1612
    %1629 = vmatprep.subr.mxu0 0.0
    %1630 = vmatpush1.msra.mxu0 %v1613
    %1631 = vmatprep.subr.mxu0 0.0
    %1632 = vmatpush1.msra.mxu0 %v1614
    %1633 = vmatprep.subr.mxu0 0.0
    %1634 = vmatpush1.msra.mxu0 0.0
    %1635 = vmatprep.subr.mxu0 0.0
    %1636 = vmatpush1.msra.mxu0 0.0
    %1637 = vmatprep.subr.mxu0 0.0
    %1638 = vmatpush1.msra.mxu0 0.0
    %1639 = vmatprep.subr.mxu0 0.0
    %1640 = vmatpush1.msra.mxu0 0.0
    %1641 = vmatprep.subr.mxu0 0.0
    %1642 = vmatpush1.msra.mxu0 0.0
    %1643 = vmatprep.subr.mxu0 0.0
    %1644 = vmatpush1.msra.mxu0 0.0
    %1645 = vmatprep.subr.mxu0 0.0
    %1646 = vmatpush1.msra.mxu0 0.0
    %1647 = vmatprep.subr.mxu0 0.0
    %1648 = vmatpush1.msra.mxu0 0.0
    %1649 = vmatprep.subr.mxu0 0.0
    %1650 = vmatpush1.msra.mxu0 0.0
    %1651 = vmatprep.subr.mxu0 0.0
    %1652 = vmatpush1.msra.mxu0 0.0
    %1653 = vmatprep.subr.mxu0 0.0
    %1654 = vmatpush1.msra.mxu0 0.0
    %1655 = vmatprep.subr.mxu0 0.0
    %1656 = vmatpush1.msra.mxu0 0.0
    %1657 = vmatprep.subr.mxu0 0.0
    %1658 = vmatpush1.msra.mxu0 0.0
    %1659 = vmatprep.subr.mxu0 0.0
    %1660 = vmatpush1.msra.mxu0 0.0
    %1661 = vmatprep.subr.mxu0 0.0
    %1662 = vmatpush1.msra.mxu0 0.0
    %1663 = vmatprep.subr.mxu0 0.0
    %1664 = vmatpush1.msra.mxu0 0.0
    %1665 = vmatprep.subr.mxu0 0.0
    %1666 = vmatpush1.msra.mxu0 0.0
    %1667 = vmatprep.subr.mxu0 0.0
    %1668 = vmatpush1.msra.mxu0 0.0
    %1669 = vmatprep.subr.mxu0 0.0
    %1670 = vmatpush1.msra.mxu0 0.0
    %1671 = vmatprep.subr.mxu0 0.0
    %1672 = vmatpush1.msra.mxu0 0.0
    %1673 = vmatprep.subr.mxu0 0.0
    %1674 = vmatpush1.msra.mxu0 0.0
    %1675 = vmatprep.subr.mxu0 0.0
    %1676 = vmatpush1.msra.mxu0 0.0
    %1677 = vmatprep.subr.mxu0 0.0
    %1678 = vmatpush1.msra.mxu0 0.0
    %1679 = vmatprep.subr.mxu0 0.0
    %1680 = vmatpush1.msra.mxu0 0.0
    %1681 = vmatprep.subr.mxu0 0.0
    %1682 = vmatpush1.msra.mxu0 0.0
    %1683 = vmatprep.subr.mxu0 0.0
    %1684 = vmatpush1.msra.mxu0 0.0
    %1685 = vmatprep.subr.mxu0 0.0
    %1686 = vmatpush1.msra.mxu0 0.0
    %1687 = vmatprep.subr.mxu0 0.0
    %1688 = vmatpush1.msra.mxu0 0.0
    %1689 = vmatprep.mubr.f32.mxu0 0.0
    %1690 = vmatmul.mubr.f32.gmra.mrb[0].mxu0 %v1623
    %v1691 = vpop.f32.mrb[0].mxu0
    %v1692 = vadd.f32 %v1620, %v1691
    %v1693 = vpop.f32.mrb[0].mxu0
    %1694 = vdwg.mxu0
    %1695 = vst [vmem:[#allocation2] sm:$0x3] %v1692
    // Predicated region
    $region70: #{gat_mnist_forward.1} parent=1 // pred_check
      _
    $region71: #{gat_mnist_forward.1} parent=1 // pred_check_branch
      %1697 = sbr.rel (0) target = $region73
    $region72: #{gat_mnist_forward.1} parent=1 // pred_region
      %s1699 = ssub.s32 32, 32
      %1700 = vsyncadd [#allocation3], %s1699
      %s1702 = sshll.u32 [#allocation2], 4
      %s1703 = int_to_ptr.vmem [resolvable:$true] %s1702
      %1705 = dma.vmem_to_hbm [thread:$0]  %s1703, 32, %s17, [#allocation3]
    $region73: #{gat_mnist_forward.1} parent=1 // pred_fallthru
      _
    // Predicated region
    $region74: #{gat_mnist_forward.1} parent=1 // pred_check
      _
    $region75: #{gat_mnist_forward.1} parent=1 // pred_check_branch
      %1707 = sbr.rel (0) target = $region77
    $region76: #{gat_mnist_forward.1} parent=1 // pred_region
      %1708 = dma.done [#allocation3], 32
    $region77: #{gat_mnist_forward.1} parent=1 // pred_fallthru
      _
    %1709 = vsyncpa [#allocation3], 1

</llo_original>
